<compile_context>
chip_gen: v7x
topology: tpu7x:2x2x1
jax: 0.10.0
libtpu: 0.0.40
codegen_flags: <defaults>
</compile_context>

<pallas_src>
import functools

import jax
import jax.numpy as jnp
from jax import lax
from jax.experimental import pallas as pl
from jax.experimental.pallas import tpu as pltpu

# model dimensions (satisfy the chained-Linear constraints:
#   new_feature_dim[0] == feature_dim[1], new_feature_dim[1] == feature_dim[2])
FEATURE_DIM = (32, 16, 8)       # feature_dim
NEW_FEATURE_DIM = (16, 8, 32)   # new_feature_dim
D = NEW_FEATURE_DIM[-1]         # attention feature dim (num_heads = 1)
LN_EPS = 1e-5


# --------------------------------- kernel ---------------------------------
def _att_model_kernel(x_ref, wpca_ref, wqkv_ref, wo_ref, bcol_ref,
                      whead_ref, bhead_ref, out_ref, *, chunk_items):
    b_blk, S, F0 = x_ref.shape
    R = b_blk * S
    CR = chunk_items * S            # rows per packed-attention chunk
    n_chunks = b_blk // chunk_items
    cdt = wqkv_ref.dtype            # matmul-input dtype (f32 default, bf16 opt.)

    x = x_ref[...].reshape(R, F0)   # [R, F0] (merge batch & seq)

    b_col = bcol_ref[...]           # [5D, 1] packed column biases (f32)
    b_pca = b_col[0:D]              # [D, 1]
    b_qkv = b_col[D:4 * D]          # [3D, 1]
    b_out = b_col[4 * D:5 * D]      # [D, 1]

    # --- fused PCA chain, feature-major: h_T[d, r] = sum_f Wpca_T[d, f] x[r, f]
    #     (x transpose folded into the contraction dims; no XLU transpose) ---
    h_t = lax.dot_general(wpca_ref[...], x, (((1,), (1,)), ((), ())),
                          preferred_element_type=jnp.float32) + b_pca      # [D, R]

    # --- fused Q|K|V projection (1/sqrt(D) attention scale folded into Q) ---
    qkv_t = jnp.dot(wqkv_ref[...], h_t.astype(cdt),
                    preferred_element_type=jnp.float32) + b_qkv            # [3D, R]
    q_t = qkv_t[0 * D:1 * D]        # [D, R]
    k_t = qkv_t[1 * D:2 * D]
    v_t = qkv_t[2 * D:3 * D]

    # --- chunk-packed block-diagonal attention ---
    # chunk_items batch items share one [CR,CR] score matmul; the additive
    # block-diagonal mask (rows//S == cols//S on-block, -1e30 off-block) is
    # applied BEFORE max/exp/sum so cross-batch scores never leak into the
    # softmax normalization.  Built once, reused for every chunk.
    if chunk_items > 1:
        rb = lax.broadcasted_iota(jnp.int32, (CR, CR), 0) // S
        cb = lax.broadcasted_iota(jnp.int32, (CR, CR), 1) // S
        mask = jnp.where(rb == cb, jnp.float32(0.0), jnp.float32(-1e30))
    else:
        mask = None                 # single item per chunk -> fully on-block

    ctx_chunks = []
    for c in range(n_chunks):
        lo, hi = c * CR, (c + 1) * CR
        q_c = q_t[:, lo:hi].astype(cdt)      # [D, CR]
        k_c = k_t[:, lo:hi].astype(cdt)
        v_c = v_t[:, lo:hi].astype(cdt)
        # scores[i, j] = q_i . k_j  (contract the feature/sublane dim)
        s = lax.dot_general(q_c, k_c, (((0,), (0,)), ((), ())),
                            preferred_element_type=jnp.float32)            # [CR, CR]
        if mask is not None:
            s = s + mask
        s = jnp.exp(s - jnp.max(s, axis=-1, keepdims=True))
        s = s * pl.reciprocal(jnp.sum(s, axis=-1, keepdims=True), approx=True)
        # ctx_T[d, i] = sum_j v_T[d, j] * att[i, j]
        ctx_chunks.append(
            lax.dot_general(v_c, s.astype(cdt), (((1,), (1,)), ((), ())),
                            preferred_element_type=jnp.float32))           # [D, CR]
    ctx_t = ctx_chunks[0] if n_chunks == 1 else jnp.concatenate(ctx_chunks, axis=1)

    # --- attention output projection + residual (dropout == identity) ---
    o_t = h_t + jnp.dot(wo_ref[...], ctx_t.astype(cdt),
                        preferred_element_type=jnp.float32) + b_out        # [D, R]

    # --- LayerNorm over the feature (sublane) axis; gamma/beta folded into
    #     the first head linear ---
    mu = jnp.mean(o_t, axis=0, keepdims=True)                              # [1, R]
    var = jnp.mean((o_t - mu) ** 2, axis=0, keepdims=True)
    on_t = (o_t - mu) * lax.rsqrt(var + LN_EPS)                            # [D, R]

    # --- head MLP, feature-major -> lane-dense [1, R] final store ---
    w_head = whead_ref[...]                # [8, D+12] packed transposed head weights
    b_head = bhead_ref[...]                # [8, 3]    packed transposed head biases
    w1t = w_head[:, 0:D]                   # [8, D]   (LayerNorm gamma folded in)
    w2t = w_head[0:4, D:D + 8]             # [4, 8]
    w3t = w_head[0:1, D + 8:D + 12]        # [1, 4]
    b1t = b_head[:, 0:1]                   # [8, 1]   (LayerNorm beta folded in)
    b2t = b_head[0:4, 1:2]                 # [4, 1]
    b3t = b_head[0:1, 2:3]                 # [1, 1]

    h1 = jnp.maximum(jnp.dot(w1t, on_t, preferred_element_type=jnp.float32) + b1t, 0.0)  # [8, R]
    h2 = jnp.maximum(jnp.dot(w2t, h1, preferred_element_type=jnp.float32) + b2t, 0.0)    # [4, R]
    h3 = jnp.maximum(jnp.dot(w3t, h2, preferred_element_type=jnp.float32) + b3t, 0.0)    # [1, R]

    out_ref[0] = h3                        # lane-dense [1, R] slab


# --------------------------------- wrapper ---------------------------------
def _choose_batch_block(B, S, target_rows=2048, min_grid_steps=4):
    """Largest divisor of B with b_blk*S <= target_rows, preferring to leave at
    least `min_grid_steps` grid steps.  Per-step overhead (~0.35 us) and DMA
    size set the floor on useful block size (128-row tiles hit ~29% of HBM
    roofline, 1024 ~86%); 1-4K rows per step is still tiny vs. VMEM on every
    generation.  Keeping >=2 (ideally >=4) grid steps matters on v7x, whose
    second TensorCore is only reached via the "parallel" grid axis."""
    divisors = [c for c in range(1, B + 1) if B % c == 0 and c * S <= target_rows]
    if not divisors:
        return 1
    for steps in (min_grid_steps, 2, 1):
        pref = [c for c in divisors if B // c >= steps]
        if pref:
            return max(pref)
    return max(divisors)


def _choose_attn_chunk(b_blk, S, target_chunk_rows=256):
    """Largest divisor C of b_blk with C*S <= target_chunk_rows.  256 rows
    matches the 256-wide MXU on v6e/v7x (one native pass per score/ctx matmul);
    pass 128 on v5e to match its 128x128 array."""
    best = 1
    for c in range(1, b_blk + 1):
        if b_blk % c == 0 and c * S <= target_chunk_rows:
            best = c
    return best


def att_model_pallas(x, packed_params, *, b_blk=None, target_rows=2048,
                     min_grid_steps=4, attn_chunk_rows=256,
                     compute_dtype=jnp.float32):
    B, S, F0 = x.shape
    assert F0 == FEATURE_DIM[0]
    if b_blk is None:
        b_blk = _choose_batch_block(B, S, target_rows, min_grid_steps)
    assert B % b_blk == 0
    n_blk = B // b_blk
    R = b_blk * S
    chunk_items = _choose_attn_chunk(b_blk, S, attn_chunk_rows)
    assert b_blk % chunk_items == 0

    # Optional bf16 fast path (v6e/v7x): halves the streamed x bytes and uses
    # the MXU's native dtype.  Only x and the three big weight matrices are
    # cast; biases, softmax, LayerNorm and all matmul accumulation stay f32.
    w_pca_t, w_qkv_t, w_o_t, b_col, w_head, b_head = packed_params
    x = x.astype(compute_dtype)
    w_pca_t = w_pca_t.astype(compute_dtype)
    w_qkv_t = w_qkv_t.astype(compute_dtype)
    w_o_t = w_o_t.astype(compute_dtype)
    inputs = (x, w_pca_t, w_qkv_t, w_o_t, b_col, w_head, b_head)

    in_specs = [pl.BlockSpec((b_blk, S, F0), lambda b: (b, 0, 0))]
    # Weights / biases are grid-invariant: full-array blocks, constant index map.
    for p in inputs[1:]:
        in_specs.append(pl.BlockSpec(p.shape, lambda b, _n=p.ndim: (0,) * _n))
    # NOTE: if xprof still shows exposed input DMA at large b_blk, add
    # pipeline_mode=pl.Buffered(3) to in_specs[0] only (weight blocks are
    # grid-invariant and must not be multi-buffered).

    kernel = functools.partial(_att_model_kernel, chunk_items=chunk_items)

    out = pl.pallas_call(
        kernel,
        out_shape=jax.ShapeDtypeStruct((n_blk, 1, R), jnp.float32),
        grid=(n_blk,),
        in_specs=in_specs,
        out_specs=pl.BlockSpec((1, 1, R), lambda b: (b, 0, 0)),
        compiler_params=pltpu.CompilerParams(dimension_semantics=("parallel",)),
    )(*inputs)
    return out.reshape(B, S, 1)


# ------------------- parameter init (PyTorch-Linear-like) -------------------
def _init_linear(key, fan_in, fan_out):
    kw, kb = jax.random.split(key)
    bound = 1.0 / (fan_in ** 0.5)
    w = jax.random.uniform(kw, (fan_in, fan_out), jnp.float32, -bound, bound)
    b = jax.random.uniform(kb, (1, fan_out), jnp.float32, -bound, bound)
    return w, b


def make_params(key):
    keys = jax.random.split(key, 10)
    wp1, bp1 = _init_linear(keys[0], FEATURE_DIM[0], NEW_FEATURE_DIM[0])
    wp2, bp2 = _init_linear(keys[1], FEATURE_DIM[1], NEW_FEATURE_DIM[1])
    wp3, bp3 = _init_linear(keys[2], FEATURE_DIM[2], NEW_FEATURE_DIM[2])
    wq, bq = _init_linear(keys[3], D, D)
    wk, bk = _init_linear(keys[4], D, D)
    wv, bv = _init_linear(keys[5], D, D)
    wo, bo = _init_linear(keys[6], D, D)
    ln_g = jnp.ones((1, D), jnp.float32)
    ln_b = jnp.zeros((1, D), jnp.float32)
    w1, b1 = _init_linear(keys[7], D, 8)
    w2, b2 = _init_linear(keys[8], 8, 4)
    w3, b3 = _init_linear(keys[9], 4, 1)
    return (wp1, bp1, wp2, bp2, wp3, bp3,
            wq, bq, wk, bk, wv, bv,
            wo, bo, ln_g, ln_b,
            w1, b1, w2, b2, w3, b3)


def pack_params(params):
    """Fold/concatenate the 22 raw parameters into 6 packed (feature-major) arrays."""
    (wp1, bp1, wp2, bp2, wp3, bp3,
     wq, bq, wk, bk, wv, bv,
     wo, bo, ln_g, ln_b,
     w1, b1, w2, b2, w3, b3) = params

    # PCA chain: x@wp1+bp1 -> @wp2+bp2 -> @wp3+bp3  ==  x@W_pca + b_pca
    w_pca = wp1 @ wp2 @ wp3                                        # [F0, D]
    b_pca = ((bp1 @ wp2) + bp2) @ wp3 + bp3                        # [1, D]

    # Q|K|V fused, with the 1/sqrt(D) attention scale folded into Q
    scale = float(D) ** -0.5
    w_qkv = jnp.concatenate([wq * scale, wk, wv], axis=1)          # [D, 3D]
    b_qkv = jnp.concatenate([bq * scale, bk, bv], axis=1)          # [1, 3D]

    # transposed (feature-major) weights
    w_pca_t = w_pca.T                                              # [D, F0]
    w_qkv_t = w_qkv.T                                              # [3D, D]
    w_o_t = wo.T                                                   # [D, D]

    # all biases packed into one column vector: pca | qkv | out
    b_col = jnp.concatenate([b_pca, b_qkv, bo], axis=1).T          # [5D, 1]

    # LayerNorm affine folded into head linear1; head stored transposed
    w1f = ln_g.reshape(-1, 1) * w1                                 # [D, 8]
    b1f = ln_b @ w1 + b1                                           # [1, 8]
    w1t, b1t = w1f.T, b1f.T                                        # [8, D], [8, 1]
    w2t, b2t = w2.T, b2.T                                          # [4, 8], [4, 1]
    w3t, b3t = w3.T, b3.T                                          # [1, 4], [1, 1]

    w_head = jnp.zeros((8, D + 12), jnp.float32)
    w_head = w_head.at[:, 0:D].set(w1t)
    w_head = w_head.at[0:4, D:D + 8].set(w2t)
    w_head = w_head.at[0:1, D + 8:D + 12].set(w3t)

    b_head = jnp.zeros((8, 3), jnp.float32)
    b_head = b_head.at[:, 0:1].set(b1t)
    b_head = b_head.at[0:4, 1:2].set(b2t)
    b_head = b_head.at[0:1, 2:3].set(b3t)

    return (w_pca_t, w_qkv_t, w_o_t, b_col, w_head, b_head)


# --------------- pure-JAX reference (mirrors the PyTorch forward) ---------------
def ref_forward(x, params):
    (wp1, bp1, wp2, bp2, wp3, bp3,
     wq, bq, wk, bk, wv, bv,
     wo, bo, ln_g, ln_b,
     w1, b1, w2, b2, w3, b3) = params

    h = x @ wp1 + bp1
    h = h @ wp2 + bp2
    h = h @ wp3 + bp3
    q = h @ wq + bq
    k = h @ wk + bk
    v = h @ wv + bv
    att = jnp.einsum('ijk,ilk->ijl', q, k) * (D ** -0.5)
    att = jax.nn.softmax(att, axis=2)
    ctx = jnp.einsum('ijl,ilk->ijk', att, v)
    o = ctx @ wo + bo
    o = h + o
    mu = jnp.mean(o, axis=-1, keepdims=True)
    var = jnp.mean((o - mu) ** 2, axis=-1, keepdims=True)
    o = (o - mu) / jnp.sqrt(var + LN_EPS) * ln_g + ln_b
    o = jax.nn.relu(o @ w1 + b1)
    o = jax.nn.relu(o @ w2 + b2)
    o = jax.nn.relu(o @ w3 + b3)
    return o


if __name__ == "__main__":
    key = jax.random.PRNGKey(0)
    kx, kx2, kp = jax.random.split(key, 3)

    params = make_params(kp)
    packed = pack_params(params)

    # --- primary small test (auto-chosen block; matches the module's shapes) ---
    B, S = 2, 8
    x = jax.random.normal(kx, (B, S, FEATURE_DIM[0]), jnp.float32)
    out = att_model_pallas(x, packed)
    out = jax.block_until_ready(out)
    ref = ref_forward(x, params)
    assert out.shape == (B, S, 1), out.shape
    max_diff = jnp.max(jnp.abs(out - ref))
    assert jnp.allclose(out, ref, rtol=1e-3, atol=1e-3), f"max abs diff {max_diff}"

    # --- second small test exercising the packed block-diagonal attention
    #     (chunk_items > 1 -> masked softmax, multiple chunks, multi-step grid) ---
    B2, S2 = 8, 8
    x2 = jax.random.normal(kx2, (B2, S2, FEATURE_DIM[0]), jnp.float32)
    out2 = att_model_pallas(x2, packed, b_blk=4, attn_chunk_rows=16)
    out2 = jax.block_until_ready(out2)
    ref2 = ref_forward(x2, params)
    assert out2.shape == (B2, S2, 1), out2.shape
    max_diff2 = jnp.max(jnp.abs(out2 - ref2))
    assert jnp.allclose(out2, ref2, rtol=1e-3, atol=1e-3), f"max abs diff {max_diff2}"

    print("KERNEL_OK")
</pallas_src>

<mosaic_0001>
module attributes {stable_mosaic.version = 11 : i64} {
  func.func @_att_model_kernel(%arg0: i32, %arg1: memref<1x8x32xf32, #tpu.memory_space<vmem>>, %arg2: memref<32x32xf32, #tpu.memory_space<vmem>>, %arg3: memref<96x32xf32, #tpu.memory_space<vmem>>, %arg4: memref<32x32xf32, #tpu.memory_space<vmem>>, %arg5: memref<160x1xf32, #tpu.memory_space<vmem>>, %arg6: memref<8x44xf32, #tpu.memory_space<vmem>>, %arg7: memref<8x3xf32, #tpu.memory_space<vmem>>, %arg8: memref<1x1x8xf32, #tpu.memory_space<vmem>>) attributes {dimension_semantics = [#tpu.dimension_semantics<parallel>], iteration_bounds = array<i64: 2>, scalar_prefetch = 0 : i64, scratch_operands = 0 : i64, tpu.core_type = #tpu.core_type<tc>, window_params = [{transform_indices = @transform_0, window_bounds = array<i64: 1, 8, 32>}, {pipeline_mode = #tpu.pipeline_mode<synchronous>, transform_indices = @transform_1, window_bounds = array<i64: 32, 32>}, {pipeline_mode = #tpu.pipeline_mode<synchronous>, transform_indices = @transform_2, window_bounds = array<i64: 96, 32>}, {pipeline_mode = #tpu.pipeline_mode<synchronous>, transform_indices = @transform_3, window_bounds = array<i64: 32, 32>}, {pipeline_mode = #tpu.pipeline_mode<synchronous>, transform_indices = @transform_4, window_bounds = array<i64: 160, 1>}, {pipeline_mode = #tpu.pipeline_mode<synchronous>, transform_indices = @transform_5, window_bounds = array<i64: 8, 44>}, {pipeline_mode = #tpu.pipeline_mode<synchronous>, transform_indices = @transform_6, window_bounds = array<i64: 8, 3>}, {transform_indices = @transform_7, window_bounds = array<i64: 1, 1, 8>}]} {
    %c0 = arith.constant 0 : index
    %c0_0 = arith.constant 0 : index
    %c0_1 = arith.constant 0 : index
    %0 = vector.load %arg1[%c0, %c0_0, %c0_1] : memref<1x8x32xf32, #tpu.memory_space<vmem>>, vector<1x8x32xf32>
    %1 = vector.shape_cast %0 : vector<1x8x32xf32> to vector<8x32xf32>
    %c0_2 = arith.constant 0 : index
    %c0_3 = arith.constant 0 : index
    %2 = vector.load %arg5[%c0_2, %c0_3] : memref<160x1xf32, #tpu.memory_space<vmem>>, vector<160x1xf32>
    %3 = vector.extract_strided_slice %2 {offsets = [0, 0], sizes = [32, 1], strides = [1, 1]} : vector<160x1xf32> to vector<32x1xf32>
    %4 = vector.extract_strided_slice %2 {offsets = [32, 0], sizes = [96, 1], strides = [1, 1]} : vector<160x1xf32> to vector<96x1xf32>
    %5 = vector.extract_strided_slice %2 {offsets = [128, 0], sizes = [32, 1], strides = [1, 1]} : vector<160x1xf32> to vector<32x1xf32>
    %c0_4 = arith.constant 0 : index
    %c0_5 = arith.constant 0 : index
    %6 = vector.load %arg2[%c0_4, %c0_5] : memref<32x32xf32, #tpu.memory_space<vmem>>, vector<32x32xf32>
    %cst = arith.constant dense<0.000000e+00> : vector<32x8xf32>
    %7 = tpu.matmul %6, %1, %cst {dimension_numbers = #tpu.dot_dimension_numbers<[1], [1], [0], [0], [0, 0, 1, 0], [], []>} : vector<32x32xf32>, vector<8x32xf32>, vector<32x8xf32> -> vector<32x8xf32>
    %8 = vector.broadcast %3 : vector<32x1xf32> to vector<32x8xf32>
    %9 = arith.addf %7, %8 : vector<32x8xf32>
    %c0_6 = arith.constant 0 : index
    %c0_7 = arith.constant 0 : index
    %10 = vector.load %arg3[%c0_6, %c0_7] : memref<96x32xf32, #tpu.memory_space<vmem>>, vector<96x32xf32>
    %cst_8 = arith.constant dense<0.000000e+00> : vector<96x8xf32>
    %11 = tpu.matmul %10, %9, %cst_8 {dimension_numbers = #tpu.dot_dimension_numbers<[1], [0], [0], [1], [0, 0, 1, 1], [], []>} : vector<96x32xf32>, vector<32x8xf32>, vector<96x8xf32> -> vector<96x8xf32>
    %12 = vector.broadcast %4 : vector<96x1xf32> to vector<96x8xf32>
    %13 = arith.addf %11, %12 : vector<96x8xf32>
    %14 = vector.extract_strided_slice %13 {offsets = [0, 0], sizes = [32, 8], strides = [1, 1]} : vector<96x8xf32> to vector<32x8xf32>
    %15 = vector.extract_strided_slice %13 {offsets = [32, 0], sizes = [32, 8], strides = [1, 1]} : vector<96x8xf32> to vector<32x8xf32>
    %16 = vector.extract_strided_slice %13 {offsets = [64, 0], sizes = [32, 8], strides = [1, 1]} : vector<96x8xf32> to vector<32x8xf32>
    %cst_9 = arith.constant dense<0.000000e+00> : vector<8x8xf32>
    %17 = tpu.matmul %14, %15, %cst_9 {dimension_numbers = #tpu.dot_dimension_numbers<[0], [0], [1], [1], [0, 1, 1, 1], [], []>} : vector<32x8xf32>, vector<32x8xf32>, vector<8x8xf32> -> vector<8x8xf32>
    %cst_10 = arith.constant dense<0xFF800000> : vector<8xf32>
    %18 = vector.multi_reduction <maximumf>, %17, %cst_10 [1] : vector<8x8xf32> to vector<8xf32>
    %19 = vector.shape_cast %18 : vector<8xf32> to vector<8x1xf32>
    %20 = vector.broadcast %19 : vector<8x1xf32> to vector<8x8xf32>
    %21 = arith.subf %17, %20 : vector<8x8xf32>
    %22 = math.exp %21 : vector<8x8xf32>
    %cst_11 = arith.constant dense<0.000000e+00> : vector<8xf32>
    %23 = vector.multi_reduction <add>, %22, %cst_11 [1] : vector<8x8xf32> to vector<8xf32>
    %24 = vector.shape_cast %23 : vector<8xf32> to vector<8x1xf32>
    %25 = tpu.reciprocal %24 {approx = true} : vector<8x1xf32> -> vector<8x1xf32>
    %26 = vector.broadcast %25 : vector<8x1xf32> to vector<8x8xf32>
    %27 = arith.mulf %22, %26 : vector<8x8xf32>
    %cst_12 = arith.constant dense<0.000000e+00> : vector<32x8xf32>
    %28 = tpu.matmul %16, %27, %cst_12 {dimension_numbers = #tpu.dot_dimension_numbers<[1], [1], [0], [0], [0, 0, 1, 0], [], []>} : vector<32x8xf32>, vector<8x8xf32>, vector<32x8xf32> -> vector<32x8xf32>
    %c0_13 = arith.constant 0 : index
    %c0_14 = arith.constant 0 : index
    %29 = vector.load %arg4[%c0_13, %c0_14] : memref<32x32xf32, #tpu.memory_space<vmem>>, vector<32x32xf32>
    %cst_15 = arith.constant dense<0.000000e+00> : vector<32x8xf32>
    %30 = tpu.matmul %29, %28, %cst_15 {dimension_numbers = #tpu.dot_dimension_numbers<[1], [0], [0], [1], [0, 0, 1, 1], [], []>} : vector<32x32xf32>, vector<32x8xf32>, vector<32x8xf32> -> vector<32x8xf32>
    %31 = arith.addf %9, %30 : vector<32x8xf32>
    %32 = vector.broadcast %5 : vector<32x1xf32> to vector<32x8xf32>
    %33 = arith.addf %31, %32 : vector<32x8xf32>
    %cst_16 = arith.constant dense<0.000000e+00> : vector<8xf32>
    %34 = vector.multi_reduction <add>, %33, %cst_16 [0] : vector<32x8xf32> to vector<8xf32>
    %35 = vector.shape_cast %34 : vector<8xf32> to vector<1x8xf32>
    %cst_17 = arith.constant 3.200000e+01 : f32
    %36 = vector.broadcast %cst_17 : f32 to vector<1x8xf32>
    %37 = arith.divf %35, %36 : vector<1x8xf32>
    %38 = vector.broadcast %37 : vector<1x8xf32> to vector<32x8xf32>
    %39 = arith.subf %33, %38 : vector<32x8xf32>
    %40 = arith.mulf %39, %39 : vector<32x8xf32>
    %cst_18 = arith.constant dense<0.000000e+00> : vector<8xf32>
    %41 = vector.multi_reduction <add>, %40, %cst_18 [0] : vector<32x8xf32> to vector<8xf32>
    %42 = vector.shape_cast %41 : vector<8xf32> to vector<1x8xf32>
    %cst_19 = arith.constant 3.200000e+01 : f32
    %43 = vector.broadcast %cst_19 : f32 to vector<1x8xf32>
    %44 = arith.divf %42, %43 : vector<1x8xf32>
    %45 = vector.broadcast %37 : vector<1x8xf32> to vector<32x8xf32>
    %46 = arith.subf %33, %45 : vector<32x8xf32>
    %cst_20 = arith.constant 9.99999974E-6 : f32
    %47 = vector.broadcast %cst_20 : f32 to vector<1x8xf32>
    %48 = arith.addf %44, %47 : vector<1x8xf32>
    %49 = math.rsqrt %48 : vector<1x8xf32>
    %50 = vector.broadcast %49 : vector<1x8xf32> to vector<32x8xf32>
    %51 = arith.mulf %46, %50 : vector<32x8xf32>
    %c0_21 = arith.constant 0 : index
    %c0_22 = arith.constant 0 : index
    %52 = vector.load %arg6[%c0_21, %c0_22] : memref<8x44xf32, #tpu.memory_space<vmem>>, vector<8x44xf32>
    %c0_23 = arith.constant 0 : index
    %c0_24 = arith.constant 0 : index
    %53 = vector.load %arg7[%c0_23, %c0_24] : memref<8x3xf32, #tpu.memory_space<vmem>>, vector<8x3xf32>
    %54 = vector.extract_strided_slice %52 {offsets = [0, 0], sizes = [8, 32], strides = [1, 1]} : vector<8x44xf32> to vector<8x32xf32>
    %55 = vector.extract_strided_slice %52 {offsets = [0, 32], sizes = [4, 8], strides = [1, 1]} : vector<8x44xf32> to vector<4x8xf32>
    %56 = vector.extract_strided_slice %52 {offsets = [0, 40], sizes = [1, 4], strides = [1, 1]} : vector<8x44xf32> to vector<1x4xf32>
    %57 = vector.extract_strided_slice %53 {offsets = [0, 0], sizes = [8, 1], strides = [1, 1]} : vector<8x3xf32> to vector<8x1xf32>
    %58 = vector.extract_strided_slice %53 {offsets = [0, 1], sizes = [4, 1], strides = [1, 1]} : vector<8x3xf32> to vector<4x1xf32>
    %59 = vector.extract_strided_slice %53 {offsets = [0, 2], sizes = [1, 1], strides = [1, 1]} : vector<8x3xf32> to vector<1x1xf32>
    %cst_25 = arith.constant dense<0.000000e+00> : vector<8x8xf32>
    %60 = tpu.matmul %54, %51, %cst_25 {dimension_numbers = #tpu.dot_dimension_numbers<[1], [0], [0], [1], [0, 0, 1, 1], [], []>} : vector<8x32xf32>, vector<32x8xf32>, vector<8x8xf32> -> vector<8x8xf32>
    %61 = vector.broadcast %57 : vector<8x1xf32> to vector<8x8xf32>
    %62 = arith.addf %60, %61 : vector<8x8xf32>
    %cst_26 = arith.constant 0.000000e+00 : f32
    %63 = vector.broadcast %cst_26 : f32 to vector<8x8xf32>
    %64 = arith.maximumf %62, %63 : vector<8x8xf32>
    %cst_27 = arith.constant dense<0.000000e+00> : vector<4x8xf32>
    %65 = tpu.matmul %55, %64, %cst_27 {dimension_numbers = #tpu.dot_dimension_numbers<[1], [0], [0], [1], [0, 0, 1, 1], [], []>} : vector<4x8xf32>, vector<8x8xf32>, vector<4x8xf32> -> vector<4x8xf32>
    %66 = vector.broadcast %58 : vector<4x1xf32> to vector<4x8xf32>
    %67 = arith.addf %65, %66 : vector<4x8xf32>
    %cst_28 = arith.constant 0.000000e+00 : f32
    %68 = vector.broadcast %cst_28 : f32 to vector<4x8xf32>
    %69 = arith.maximumf %67, %68 : vector<4x8xf32>
    %cst_29 = arith.constant dense<0.000000e+00> : vector<1x8xf32>
    %70 = tpu.matmul %56, %69, %cst_29 {dimension_numbers = #tpu.dot_dimension_numbers<[1], [0], [0], [1], [0, 0, 1, 1], [], []>} : vector<1x4xf32>, vector<4x8xf32>, vector<1x8xf32> -> vector<1x8xf32>
    %71 = vector.broadcast %59 : vector<1x1xf32> to vector<1x8xf32>
    %72 = arith.addf %70, %71 : vector<1x8xf32>
    %cst_30 = arith.constant 0.000000e+00 : f32
    %73 = vector.broadcast %cst_30 : f32 to vector<1x8xf32>
    %74 = arith.maximumf %72, %73 : vector<1x8xf32>
    %c0_31 = arith.constant 0 : index
    %c0_32 = arith.constant 0 : index
    %c0_33 = arith.constant 0 : index
    %75 = vector.load %arg8[%c0_31, %c0_32, %c0_33] : memref<1x1x8xf32, #tpu.memory_space<vmem>>, vector<1x1x8xf32>
    %76 = vector.shape_cast %75 : vector<1x1x8xf32> to vector<1x8xf32>
    %77 = vector.shape_cast %74 : vector<1x8xf32> to vector<1x1x8xf32>
    tpu.vector_store %arg8[%c0_31, %c0_32, %c0_33], %77 {strides = array<i32>} : memref<1x1x8xf32, #tpu.memory_space<vmem>>, vector<1x1x8xf32>,
    return
  }
  func.func @transform_0(%arg0: i32) -> (i32, i32, i32) {
    %c0_i32 = arith.constant 0 : i32
    %c0_i32_0 = arith.constant 0 : i32
    %c0_i32_1 = arith.constant 0 : i32
    return %arg0, %c0_i32, %c0_i32_0 : i32, i32, i32
  }
  func.func @transform_1(%arg0: i32) -> (i32, i32) {
    %c0_i32 = arith.constant 0 : i32
    %c0_i32_0 = arith.constant 0 : i32
    %c0_i32_1 = arith.constant 0 : i32
    return %c0_i32, %c0_i32_0 : i32, i32
  }
  func.func @transform_2(%arg0: i32) -> (i32, i32) {
    %c0_i32 = arith.constant 0 : i32
    %c0_i32_0 = arith.constant 0 : i32
    %c0_i32_1 = arith.constant 0 : i32
    return %c0_i32, %c0_i32_0 : i32, i32
  }
  func.func @transform_3(%arg0: i32) -> (i32, i32) {
    %c0_i32 = arith.constant 0 : i32
    %c0_i32_0 = arith.constant 0 : i32
    %c0_i32_1 = arith.constant 0 : i32
    return %c0_i32, %c0_i32_0 : i32, i32
  }
  func.func @transform_4(%arg0: i32) -> (i32, i32) {
    %c0_i32 = arith.constant 0 : i32
    %c0_i32_0 = arith.constant 0 : i32
    %c0_i32_1 = arith.constant 0 : i32
    return %c0_i32, %c0_i32_0 : i32, i32
  }
  func.func @transform_5(%arg0: i32) -> (i32, i32) {
    %c0_i32 = arith.constant 0 : i32
    %c0_i32_0 = arith.constant 0 : i32
    %c0_i32_1 = arith.constant 0 : i32
    return %c0_i32, %c0_i32_0 : i32, i32
  }
  func.func @transform_6(%arg0: i32) -> (i32, i32) {
    %c0_i32 = arith.constant 0 : i32
    %c0_i32_0 = arith.constant 0 : i32
    %c0_i32_1 = arith.constant 0 : i32
    return %c0_i32, %c0_i32_0 : i32, i32
  }
  func.func @transform_7(%arg0: i32) -> (i32, i32, i32) {
    %c0_i32 = arith.constant 0 : i32
    %c0_i32_0 = arith.constant 0 : i32
    %c0_i32_1 = arith.constant 0 : i32
    return %arg0, %c0_i32, %c0_i32_0 : i32, i32, i32
  }
}

</mosaic_0001>

<llo_original>
// kernel: tpu_custom_call.1
$region0: #{tpu_custom_call.1}
  #allocation0 [shape = 'u32[]', space=smem, size = 0x4, offset = 0x4, fixed_abs, tag = 'smem constant byte address 0x4 - core index']
  #allocation1 [shape = 'u32[144,128]{1,0:T(1,128)}', space=vmem, size = 0x12000, scoped, tag = 'internal scratch']
  %s0 = inlined_call_operand.vmem [shape: f32[2,8,32], index: 0, kind: input, shape index: {}]
  %s1 = inlined_call_operand.vmem [shape: f32[32,32], index: 1, kind: input, shape index: {}]
  %s2 = inlined_call_operand.vmem [shape: f32[96,32], index: 2, kind: input, shape index: {}]
  %s3 = inlined_call_operand.vmem [shape: f32[32,32], index: 3, kind: input, shape index: {}]
  %s4 = inlined_call_operand.vmem [shape: f32[160,1], index: 4, kind: input, shape index: {}]
  %s5 = inlined_call_operand.vmem [shape: f32[8,44], index: 5, kind: input, shape index: {}]
  %s6 = inlined_call_operand.vmem [shape: f32[8,3], index: 6, kind: input, shape index: {}]
  %s7 = inlined_call_operand.hbm [shape: f32[2,1,8], index: 7, kind: output, shape index: {}]
  %s8 = sld [smem:[#allocation0]]
  $region61: #{tpu_custom_call.1} parent=0
    _
  %s10 = ssub.s32 1, %s8
  %s11 = scalar_select 0, %s10, %s8
  $region1: #{tpu_custom_call.1} parent=0
    #allocation2 [shape = 'u8[1024]{0}', space=vmem, size = 0x400, scoped, tag = 'output window, operand 0']
    #allocation3 [shape = 's32[2]{0}', space=sflag, size = 0x8, scoped, tag = 'scoped memory for tpu_custom_call.1']
    %12 = vsyncpa [#allocation3], 0
    %s13 = scalar_lea.sflag [#allocation3], 1
    %14 = vsyncpa %s13, 0
    loop: start=0, step=1, limit=4
    $region2: #{tpu_custom_call.1} parent=1 // loop_pre_header
      _
    $region3: #{tpu_custom_call.1} parent=1 // loop_header
      %s16 = sphi 0, %s20
      %p17 = scmp.ge.s32.totalorder %s16, 4
      %s26 = sphi 0, %s28
      %s29 = sphi 0, %s26
      %s30 = sphi 0, %s29
      %s46 = sphi 0, %s30
      %s50 = sphi 0, %s50
      %s52 = sphi 0, %s50
      %s53 = sphi 0, %s52
      %s67 = sphi 0, %s53
      %s71 = sphi 0, %s71
      %s73 = sphi 0, %s71
      %s74 = sphi 0, %s73
      %s88 = sphi 0, %s74
      %s92 = sphi 0, %s92
      %s94 = sphi 0, %s92
      %s95 = sphi 0, %s94
      %s109 = sphi 0, %s95
      %s113 = sphi 0, %s113
      %s115 = sphi 0, %s113
      %s116 = sphi 0, %s115
      %s130 = sphi 0, %s116
      %s134 = sphi 0, %s134
      %s136 = sphi 0, %s134
      %s137 = sphi 0, %s136
      %s151 = sphi 0, %s137
      %s155 = sphi 0, %s155
      %s157 = sphi 0, %s155
      %s158 = sphi 0, %s157
      %s172 = sphi 0, %s158
      %s178 = sphi 0, %s180
      %s181 = sphi 0, %s178
      %s182 = sphi 0, %s181
      %s198 = sphi 0, %s182
    $region4: #{tpu_custom_call.1} parent=1 // loop_header_branch
      %19 = sbr.rel (%p17) target = $region8
    $region5: #{tpu_custom_call.1} parent=1 // loop_body
      %s21 = ssub.s32 %s16, 1
      %s22 = ssub.s32 %s16, 2
      %s23 = sadd.s32 %s16, 1
      %s24 = ssub.s32 %s16, %s23
      %p25 = scmp.eq.s32.totalorder %s24, 0
      %s27 = sadd.s32 %s26, 1
      %s28 = scalar_select %p25, %s26, %s27
      %p31 = pneg %p25
      %p32 = scmp.eq.s32.totalorder %s16, 1
      %p33 = por %p31, %p32
      %p34 = scmp.ne.s32.totalorder %s26, %s29
      %p35 = scmp.eq.s32.totalorder %s16, 0
      %p36 = por %p34, %p35
      %p37 = scmp.ne.s32.totalorder %s26, %s29
      %p38 = scmp.eq.s32.totalorder %s21, 1
      %p39 = por %p37, %p38
      %p40 = scmp.ne.s32.totalorder %s29, %s30
      %p41 = scmp.eq.s32.totalorder %s21, 0
      %p42 = por %p40, %p41
      %p43 = scmp.ne.s32.totalorder %s29, %s30
      %p44 = scmp.eq.s32.totalorder %s22, 1
      %p45 = por %p43, %p44
      %p47 = scmp.ne.s32.totalorder %s30, %s46
      %p48 = scmp.eq.s32.totalorder %s22, 0
      %p49 = por %p47, %p48
      %s51 = sadd.s32 %s50, 1
      %p54 = scmp.eq.s32.totalorder %s16, 1
      %p55 = scmp.ne.s32.totalorder %s50, %s52
      %p56 = scmp.eq.s32.totalorder %s16, 0
      %p57 = por %p55, %p56
      %p58 = scmp.ne.s32.totalorder %s50, %s52
      %p59 = scmp.eq.s32.totalorder %s21, 1
      %p60 = por %p58, %p59
      %p61 = scmp.ne.s32.totalorder %s52, %s53
      %p62 = scmp.eq.s32.totalorder %s21, 0
      %p63 = por %p61, %p62
      %p64 = scmp.ne.s32.totalorder %s52, %s53
      %p65 = scmp.eq.s32.totalorder %s22, 1
      %p66 = por %p64, %p65
      %p68 = scmp.ne.s32.totalorder %s53, %s67
      %p69 = scmp.eq.s32.totalorder %s22, 0
      %p70 = por %p68, %p69
      %s72 = sadd.s32 %s71, 1
      %p75 = scmp.eq.s32.totalorder %s16, 1
      %p76 = scmp.ne.s32.totalorder %s71, %s73
      %p77 = scmp.eq.s32.totalorder %s16, 0
      %p78 = por %p76, %p77
      %p79 = scmp.ne.s32.totalorder %s71, %s73
      %p80 = scmp.eq.s32.totalorder %s21, 1
      %p81 = por %p79, %p80
      %p82 = scmp.ne.s32.totalorder %s73, %s74
      %p83 = scmp.eq.s32.totalorder %s21, 0
      %p84 = por %p82, %p83
      %p85 = scmp.ne.s32.totalorder %s73, %s74
      %p86 = scmp.eq.s32.totalorder %s22, 1
      %p87 = por %p85, %p86
      %p89 = scmp.ne.s32.totalorder %s74, %s88
      %p90 = scmp.eq.s32.totalorder %s22, 0
      %p91 = por %p89, %p90
      %s93 = sadd.s32 %s92, 1
      %p96 = scmp.eq.s32.totalorder %s16, 1
      %p97 = scmp.ne.s32.totalorder %s92, %s94
      %p98 = scmp.eq.s32.totalorder %s16, 0
      %p99 = por %p97, %p98
      %p100 = scmp.ne.s32.totalorder %s92, %s94
      %p101 = scmp.eq.s32.totalorder %s21, 1
      %p102 = por %p100, %p101
      %p103 = scmp.ne.s32.totalorder %s94, %s95
      %p104 = scmp.eq.s32.totalorder %s21, 0
      %p105 = por %p103, %p104
      %p106 = scmp.ne.s32.totalorder %s94, %s95
      %p107 = scmp.eq.s32.totalorder %s22, 1
      %p108 = por %p106, %p107
      %p110 = scmp.ne.s32.totalorder %s95, %s109
      %p111 = scmp.eq.s32.totalorder %s22, 0
      %p112 = por %p110, %p111
      %s114 = sadd.s32 %s113, 1
      %p117 = scmp.eq.s32.totalorder %s16, 1
      %p118 = scmp.ne.s32.totalorder %s113, %s115
      %p119 = scmp.eq.s32.totalorder %s16, 0
      %p120 = por %p118, %p119
      %p121 = scmp.ne.s32.totalorder %s113, %s115
      %p122 = scmp.eq.s32.totalorder %s21, 1
      %p123 = por %p121, %p122
      %p124 = scmp.ne.s32.totalorder %s115, %s116
      %p125 = scmp.eq.s32.totalorder %s21, 0
      %p126 = por %p124, %p125
      %p127 = scmp.ne.s32.totalorder %s115, %s116
      %p128 = scmp.eq.s32.totalorder %s22, 1
      %p129 = por %p127, %p128
      %p131 = scmp.ne.s32.totalorder %s116, %s130
      %p132 = scmp.eq.s32.totalorder %s22, 0
      %p133 = por %p131, %p132
      %s135 = sadd.s32 %s134, 1
      %p138 = scmp.eq.s32.totalorder %s16, 1
      %p139 = scmp.ne.s32.totalorder %s134, %s136
      %p140 = scmp.eq.s32.totalorder %s16, 0
      %p141 = por %p139, %p140
      %p142 = scmp.ne.s32.totalorder %s134, %s136
      %p143 = scmp.eq.s32.totalorder %s21, 1
      %p144 = por %p142, %p143
      %p145 = scmp.ne.s32.totalorder %s136, %s137
      %p146 = scmp.eq.s32.totalorder %s21, 0
      %p147 = por %p145, %p146
      %p148 = scmp.ne.s32.totalorder %s136, %s137
      %p149 = scmp.eq.s32.totalorder %s22, 1
      %p150 = por %p148, %p149
      %p152 = scmp.ne.s32.totalorder %s137, %s151
      %p153 = scmp.eq.s32.totalorder %s22, 0
      %p154 = por %p152, %p153
      %s156 = sadd.s32 %s155, 1
      %p159 = scmp.eq.s32.totalorder %s16, 1
      %p160 = scmp.ne.s32.totalorder %s155, %s157
      %p161 = scmp.eq.s32.totalorder %s16, 0
      %p162 = por %p160, %p161
      %p163 = scmp.ne.s32.totalorder %s155, %s157
      %p164 = scmp.eq.s32.totalorder %s21, 1
      %p165 = por %p163, %p164
      %p166 = scmp.ne.s32.totalorder %s157, %s158
      %p167 = scmp.eq.s32.totalorder %s21, 0
      %p168 = por %p166, %p167
      %p169 = scmp.ne.s32.totalorder %s157, %s158
      %p170 = scmp.eq.s32.totalorder %s22, 1
      %p171 = por %p169, %p170
      %p173 = scmp.ne.s32.totalorder %s158, %s172
      %p174 = scmp.eq.s32.totalorder %s22, 0
      %p175 = por %p173, %p174
      %s176 = ssub.s32 %s16, %s23
      %p177 = scmp.eq.s32.totalorder %s176, 0
      %s179 = sadd.s32 %s178, 1
      %s180 = scalar_select %p177, %s178, %s179
      %p183 = pneg %p177
      %p184 = scmp.eq.s32.totalorder %s16, 1
      %p185 = por %p183, %p184
      %p186 = scmp.ne.s32.totalorder %s178, %s181
      %p187 = scmp.eq.s32.totalorder %s16, 0
      %p188 = por %p186, %p187
      %p189 = scmp.ne.s32.totalorder %s178, %s181
      %p190 = scmp.eq.s32.totalorder %s21, 1
      %p191 = por %p189, %p190
      %p192 = scmp.ne.s32.totalorder %s181, %s182
      %p193 = scmp.eq.s32.totalorder %s21, 0
      %p194 = por %p192, %p193
      %p195 = scmp.ne.s32.totalorder %s181, %s182
      %p196 = scmp.eq.s32.totalorder %s22, 1
      %p197 = por %p195, %p196
      %p199 = scmp.ne.s32.totalorder %s182, %s198
      %p200 = scmp.eq.s32.totalorder %s22, 0
      %p201 = por %p199, %p200
      %p202 = scmp.le.s32.totalorder 1, %s16
      %p203 = scmp.lt.s32.totalorder %s16, 3
      %p204 = pnand %p202, %p203
      %p205 = pneg %p204
      // Predicated region
      $region9: #{tpu_custom_call.1} parent=5 // pred_check
        _
      $region10: #{tpu_custom_call.1} parent=5 // pred_check_branch
        %207 = sbr.rel (%p204) target = $region12
      $region11: #{tpu_custom_call.1} parent=5 // pred_region
        %s208 = ssub.s32 %s16, 1
        // Predicated region
        $region13: #{tpu_custom_call.1} parent=11 // pred_check
          %p209 = pneg %p63
        $region14: #{tpu_custom_call.1} parent=11 // pred_check_branch
          %211 = sbr.rel (%p209) target = $region16
        $region15: #{tpu_custom_call.1} parent=11 // pred_region
          _
        $region16: #{tpu_custom_call.1} parent=11 // pred_fallthru
          _
        // Predicated region
        $region17: #{tpu_custom_call.1} parent=11 // pred_check
          %p212 = pneg %p84
        $region18: #{tpu_custom_call.1} parent=11 // pred_check_branch
          %214 = sbr.rel (%p212) target = $region20
        $region19: #{tpu_custom_call.1} parent=11 // pred_region
          _
        $region20: #{tpu_custom_call.1} parent=11 // pred_fallthru
          _
        // Predicated region
        $region21: #{tpu_custom_call.1} parent=11 // pred_check
          %p215 = pneg %p105
        $region22: #{tpu_custom_call.1} parent=11 // pred_check_branch
          %217 = sbr.rel (%p215) target = $region24
        $region23: #{tpu_custom_call.1} parent=11 // pred_region
          _
        $region24: #{tpu_custom_call.1} parent=11 // pred_fallthru
          _
        // Predicated region
        $region25: #{tpu_custom_call.1} parent=11 // pred_check
          %p218 = pneg %p126
        $region26: #{tpu_custom_call.1} parent=11 // pred_check_branch
          %220 = sbr.rel (%p218) target = $region28
        $region27: #{tpu_custom_call.1} parent=11 // pred_region
          _
        $region28: #{tpu_custom_call.1} parent=11 // pred_fallthru
          _
        // Predicated region
        $region29: #{tpu_custom_call.1} parent=11 // pred_check
          %p221 = pneg %p147
        $region30: #{tpu_custom_call.1} parent=11 // pred_check_branch
          %223 = sbr.rel (%p221) target = $region32
        $region31: #{tpu_custom_call.1} parent=11 // pred_region
          _
        $region32: #{tpu_custom_call.1} parent=11 // pred_fallthru
          _
        // Predicated region
        $region33: #{tpu_custom_call.1} parent=11 // pred_check
          %p224 = pneg %p168
        $region34: #{tpu_custom_call.1} parent=11 // pred_check_branch
          %226 = sbr.rel (%p224) target = $region36
        $region35: #{tpu_custom_call.1} parent=11 // pred_region
          _
        $region36: #{tpu_custom_call.1} parent=11 // pred_fallthru
          _
      $region12: #{tpu_custom_call.1} parent=5 // pred_fallthru
        _
      %p227 = scmp.lt.s32.totalorder %s16, 2
      // Predicated region
      $region37: #{tpu_custom_call.1} parent=5 // pred_check
        %p228 = pneg %p227
      $region38: #{tpu_custom_call.1} parent=5 // pred_check_branch
        %230 = sbr.rel (%p228) target = $region40
      $region39: #{tpu_custom_call.1} parent=5 // pred_region
        // Predicated region
        $region41: #{tpu_custom_call.1} parent=39 // pred_check
          %p231 = pneg %p36
        $region42: #{tpu_custom_call.1} parent=39 // pred_check_branch
          %233 = sbr.rel (%p231) target = $region44
        $region43: #{tpu_custom_call.1} parent=39 // pred_region
          %p234 = scmp.lt.s32.totalorder %s16, 1
          %s235 = scalar_select %p234, %s16, 1
          %s236 = smul.addr %s235, 8
          %s237 = scalar_lea.vmem %s0, %s236
        $region44: #{tpu_custom_call.1} parent=39 // pred_fallthru
          _
      $region40: #{tpu_custom_call.1} parent=5 // pred_fallthru
        _
      %p238 = scmp.le.s32.totalorder 1, %s16
      %p239 = scmp.lt.s32.totalorder %s16, 3
      %p240 = pnand %p238, %p239
      %p241 = pneg %p240
      // Predicated region
      $region45: #{tpu_custom_call.1} parent=5 // pred_check
        _
      $region46: #{tpu_custom_call.1} parent=5 // pred_check_branch
        %243 = sbr.rel (%p240) target = $region48
      $region47: #{tpu_custom_call.1} parent=5 // pred_region
        %s244 = ssub.s32 %s16, 1
        %p245 = scmp.lt.s32.totalorder %s21, 1
        %s246 = scalar_select %p245, %s21, 1
        %s247 = smul.addr %s246, 8
        %s248 = scalar_lea.vmem %s0, %s247
        %p249 = pneg %p42
        %p250 = pneg %p39
        %p251 = pneg %p63
        %p252 = pneg %p60
        %p253 = pneg %p84
        %p254 = pneg %p81
        %p255 = pneg %p105
        %p256 = pneg %p102
        %p257 = pneg %p126
        %p258 = pneg %p123
        %p259 = pneg %p147
        %p260 = pneg %p144
        %p261 = pneg %p168
        %p262 = pneg %p165
        %p263 = pneg %p194
        %p264 = pneg %p191
        %s265 = sand.u32 %s181, 1
        %s266 = scalar_lea.sflag [#allocation3], %s265
        %s267 = sand.u32 %s181, 1
        %s268 = scalar_lea.vmem [#allocation2], %s267
        %p269 = scmp.lt.s32.totalorder %s21, 1
        %s270 = scalar_select %p269, %s21, 1
        %s271 = smul.addr %s270, 8
        %s272 = scalar_lea.vmem %s0, %s271
        %v273 = vld [vmem:[%s272] sm:$0xff]
        %v274 = vld [vmem:[%s4] sm:$0xff]
        %v275 = vld [vmem:[%s4 + $0x8] sm:$0xff]
        %v276 = vld [vmem:[%s4 + $0x10] sm:$0xff]
        %v277 = vld [vmem:[%s4 + $0x18] sm:$0xff]
        %v278 = vld [vmem:[%s4 + $0x20] sm:$0xff]
        %v279 = vld [vmem:[%s4 + $0x28] sm:$0xff]
        %v280 = vld [vmem:[%s4 + $0x30] sm:$0xff]
        %v281 = vld [vmem:[%s4 + $0x38] sm:$0xff]
        %v282 = vld [vmem:[%s4 + $0x40] sm:$0xff]
        %v283 = vld [vmem:[%s4 + $0x48] sm:$0xff]
        %v284 = vld [vmem:[%s4 + $0x50] sm:$0xff]
        %v285 = vld [vmem:[%s4 + $0x58] sm:$0xff]
        %v286 = vld [vmem:[%s4 + $0x60] sm:$0xff]
        %v287 = vld [vmem:[%s4 + $0x68] sm:$0xff]
        %v288 = vld [vmem:[%s4 + $0x70] sm:$0xff]
        %v289 = vld [vmem:[%s4 + $0x78] sm:$0xff]
        %v290 = vld [vmem:[%s4 + $0x80] sm:$0xff]
        %v291 = vld [vmem:[%s4 + $0x88] sm:$0xff]
        %v292 = vld [vmem:[%s4 + $0x90] sm:$0xff]
        %v293 = vld [vmem:[%s4 + $0x98] sm:$0xff]
        %v294 = vld [vmem:[%s1] sm:$0xff]
        %v295 = vld [vmem:[%s1 + $0x8] sm:$0xff]
        %v296 = vld [vmem:[%s1 + $0x10] sm:$0xff]
        %v297 = vld [vmem:[%s1 + $0x18] sm:$0xff]
        %299 = vset.pattern.permute.xlu0 0
        %300 = vperm.xlu0 %299, %v274
        %v301 = vpop.permute.xlu0 %300
        %304 = vset.pattern.permute.xlu0 0
        %305 = vperm.xlu0 %304, %v275
        %v306 = vpop.permute.xlu0 %305
        %309 = vset.pattern.permute.xlu0 0
        %310 = vperm.xlu0 %309, %v276
        %v311 = vpop.permute.xlu0 %310
        %314 = vset.pattern.permute.xlu0 0
        %315 = vperm.xlu0 %314, %v277
        %v316 = vpop.permute.xlu0 %315
        %vm318 = vcmask 261120
        %v320 = vsel %vm318, %v294, 0
        %v323 = vsel %vm318, %v295, 0
        %v326 = vsel %vm318, %v296, 0
        %v329 = vsel %vm318, %v297, 0
        %v332 = vsel %vm318, %v273, 0
        %334 = vmatprep.subr.mxu0 0.0
        %335 = vmatpush1.xpose.msra.mxu0 %v332
        %336 = vmatprep.subr.mxu0 0.0
        %337 = vmatpush1.xpose.msra.mxu0 0.0
        %338 = vmatprep.subr.mxu0 0.0
        %339 = vmatpush1.xpose.msra.mxu0 0.0
        %340 = vmatprep.subr.mxu0 0.0
        %341 = vmatpush1.xpose.msra.mxu0 0.0
        %342 = vmatprep.subr.mxu0 0.0
        %343 = vmatpush1.xpose.msra.mxu0 0.0
        %344 = vmatprep.subr.mxu0 0.0
        %345 = vmatpush1.xpose.msra.mxu0 0.0
        %346 = vmatprep.subr.mxu0 0.0
        %347 = vmatpush1.xpose.msra.mxu0 0.0
        %348 = vmatprep.subr.mxu0 0.0
        %349 = vmatpush1.xpose.msra.mxu0 0.0
        %350 = vmatprep.subr.mxu0 0.0
        %351 = vmatpush1.xpose.msra.mxu0 0.0
        %352 = vmatprep.subr.mxu0 0.0
        %353 = vmatpush1.xpose.msra.mxu0 0.0
        %354 = vmatprep.subr.mxu0 0.0
        %355 = vmatpush1.xpose.msra.mxu0 0.0
        %356 = vmatprep.subr.mxu0 0.0
        %357 = vmatpush1.xpose.msra.mxu0 0.0
        %358 = vmatprep.subr.mxu0 0.0
        %359 = vmatpush1.xpose.msra.mxu0 0.0
        %360 = vmatprep.subr.mxu0 0.0
        %361 = vmatpush1.xpose.msra.mxu0 0.0
        %362 = vmatprep.subr.mxu0 0.0
        %363 = vmatpush1.xpose.msra.mxu0 0.0
        %364 = vmatprep.subr.mxu0 0.0
        %365 = vmatpush1.xpose.msra.mxu0 0.0
        %366 = vmatprep.subr.mxu0 0.0
        %367 = vmatpush1.xpose.msra.mxu0 0.0
        %368 = vmatprep.subr.mxu0 0.0
        %369 = vmatpush1.xpose.msra.mxu0 0.0
        %370 = vmatprep.subr.mxu0 0.0
        %371 = vmatpush1.xpose.msra.mxu0 0.0
        %372 = vmatprep.subr.mxu0 0.0
        %373 = vmatpush1.xpose.msra.mxu0 0.0
        %374 = vmatprep.subr.mxu0 0.0
        %375 = vmatpush1.xpose.msra.mxu0 0.0
        %376 = vmatprep.subr.mxu0 0.0
        %377 = vmatpush1.xpose.msra.mxu0 0.0
        %378 = vmatprep.subr.mxu0 0.0
        %379 = vmatpush1.xpose.msra.mxu0 0.0
        %380 = vmatprep.subr.mxu0 0.0
        %381 = vmatpush1.xpose.msra.mxu0 0.0
        %382 = vmatprep.subr.mxu0 0.0
        %383 = vmatpush1.xpose.msra.mxu0 0.0
        %384 = vmatprep.subr.mxu0 0.0
        %385 = vmatpush1.xpose.msra.mxu0 0.0
        %386 = vmatprep.subr.mxu0 0.0
        %387 = vmatpush1.xpose.msra.mxu0 0.0
        %388 = vmatprep.subr.mxu0 0.0
        %389 = vmatpush1.xpose.msra.mxu0 0.0
        %390 = vmatprep.subr.mxu0 0.0
        %391 = vmatpush1.xpose.msra.mxu0 0.0
        %392 = vmatprep.subr.mxu0 0.0
        %393 = vmatpush1.xpose.msra.mxu0 0.0
        %394 = vmatprep.subr.mxu0 0.0
        %395 = vmatpush1.xpose.msra.mxu0 0.0
        %396 = vmatprep.subr.mxu0 0.0
        %397 = vmatpush1.xpose.msra.mxu0 0.0
        %398 = vmatprep.mubr.f32.mxu0 0.0
        %399 = vmatmul.mubr.f32.gmra.mrb[0].mxu0 %v320
        %v400 = vpop.f32.mrb[0].mxu0
        %v401 = vadd.f32 %v301, %v400
        %v402 = vpop.f32.mrb[0].mxu0
        %403 = vmatprep.mubr.f32.mxu0 0.0
        %404 = vmatmul.mubr.f32.gmra.mrb[0].mxu0 %v323
        %v405 = vpop.f32.mrb[0].mxu0
        %v406 = vadd.f32 %v306, %v405
        %v407 = vpop.f32.mrb[0].mxu0
        %408 = vmatprep.mubr.f32.mxu0 0.0
        %409 = vmatmul.mubr.f32.gmra.mrb[0].mxu0 %v326
        %v410 = vpop.f32.mrb[0].mxu0
        %v411 = vadd.f32 %v311, %v410
        %v412 = vpop.f32.mrb[0].mxu0
        %413 = vmatprep.mubr.f32.mxu0 0.0
        %414 = vmatmul.mubr.f32.gmra.mrb[0].mxu0 %v329
        %v415 = vpop.f32.mrb[0].mxu0
        %v416 = vadd.f32 %v316, %v415
        %v417 = vpop.f32.mrb[0].mxu0
        %418 = vdwg.mxu0
        %v419 = vld [vmem:[%s2] sm:$0xff]
        %v420 = vld [vmem:[%s2 + $0x8] sm:$0xff]
        %v421 = vld [vmem:[%s2 + $0x10] sm:$0xff]
        %v422 = vld [vmem:[%s2 + $0x18] sm:$0xff]
        %v423 = vld [vmem:[%s2 + $0x20] sm:$0xff]
        %v424 = vld [vmem:[%s2 + $0x28] sm:$0xff]
        %v425 = vld [vmem:[%s2 + $0x30] sm:$0xff]
        %v426 = vld [vmem:[%s2 + $0x38] sm:$0xff]
        %v427 = vld [vmem:[%s2 + $0x40] sm:$0xff]
        %v428 = vld [vmem:[%s2 + $0x48] sm:$0xff]
        %v429 = vld [vmem:[%s2 + $0x50] sm:$0xff]
        %v430 = vld [vmem:[%s2 + $0x58] sm:$0xff]
        %432 = vset.pattern.permute.xlu0 0
        %433 = vperm.xlu0 %432, %v278
        %v434 = vpop.permute.xlu0 %433
        %437 = vset.pattern.permute.xlu0 0
        %438 = vperm.xlu0 %437, %v279
        %v439 = vpop.permute.xlu0 %438
        %442 = vset.pattern.permute.xlu0 0
        %443 = vperm.xlu0 %442, %v280
        %v444 = vpop.permute.xlu0 %443
        %447 = vset.pattern.permute.xlu0 0
        %448 = vperm.xlu0 %447, %v281
        %v449 = vpop.permute.xlu0 %448
        %452 = vset.pattern.permute.xlu0 0
        %453 = vperm.xlu0 %452, %v282
        %v454 = vpop.permute.xlu0 %453
        %457 = vset.pattern.permute.xlu0 0
        %458 = vperm.xlu0 %457, %v283
        %v459 = vpop.permute.xlu0 %458
        %462 = vset.pattern.permute.xlu0 0
        %463 = vperm.xlu0 %462, %v284
        %v464 = vpop.permute.xlu0 %463
        %467 = vset.pattern.permute.xlu0 0
        %468 = vperm.xlu0 %467, %v285
        %v469 = vpop.permute.xlu0 %468
        %472 = vset.pattern.permute.xlu0 0
        %473 = vperm.xlu0 %472, %v286
        %v474 = vpop.permute.xlu0 %473
        %477 = vset.pattern.permute.xlu0 0
        %478 = vperm.xlu0 %477, %v287
        %v479 = vpop.permute.xlu0 %478
        %482 = vset.pattern.permute.xlu0 0
        %483 = vperm.xlu0 %482, %v288
        %v484 = vpop.permute.xlu0 %483
        %487 = vset.pattern.permute.xlu0 0
        %488 = vperm.xlu0 %487, %v289
        %v489 = vpop.permute.xlu0 %488
        %v492 = vsel %vm318, %v419, 0
        %v495 = vsel %vm318, %v420, 0
        %v498 = vsel %vm318, %v421, 0
        %v501 = vsel %vm318, %v422, 0
        %v504 = vsel %vm318, %v423, 0
        %v507 = vsel %vm318, %v424, 0
        %v510 = vsel %vm318, %v425, 0
        %v513 = vsel %vm318, %v426, 0
        %v516 = vsel %vm318, %v427, 0
        %v519 = vsel %vm318, %v428, 0
        %v522 = vsel %vm318, %v429, 0
        %v525 = vsel %vm318, %v430, 0
        %527 = vmatprep.subr.mxu0 0.0
        %528 = vmatpush1.msra.mxu0 %v401
        %529 = vmatprep.subr.mxu0 0.0
        %530 = vmatpush1.msra.mxu0 %v406
        %531 = vmatprep.subr.mxu0 0.0
        %532 = vmatpush1.msra.mxu0 %v411
        %533 = vmatprep.subr.mxu0 0.0
        %534 = vmatpush1.msra.mxu0 %v416
        %535 = vmatprep.subr.mxu0 0.0
        %536 = vmatpush1.msra.mxu0 0.0
        %537 = vmatprep.subr.mxu0 0.0
        %538 = vmatpush1.msra.mxu0 0.0
        %539 = vmatprep.subr.mxu0 0.0
        %540 = vmatpush1.msra.mxu0 0.0
        %541 = vmatprep.subr.mxu0 0.0
        %542 = vmatpush1.msra.mxu0 0.0
        %543 = vmatprep.subr.mxu0 0.0
        %544 = vmatpush1.msra.mxu0 0.0
        %545 = vmatprep.subr.mxu0 0.0
        %546 = vmatpush1.msra.mxu0 0.0
        %547 = vmatprep.subr.mxu0 0.0
        %548 = vmatpush1.msra.mxu0 0.0
        %549 = vmatprep.subr.mxu0 0.0
        %550 = vmatpush1.msra.mxu0 0.0
        %551 = vmatprep.subr.mxu0 0.0
        %552 = vmatpush1.msra.mxu0 0.0
        %553 = vmatprep.subr.mxu0 0.0
        %554 = vmatpush1.msra.mxu0 0.0
        %555 = vmatprep.subr.mxu0 0.0
        %556 = vmatpush1.msra.mxu0 0.0
        %557 = vmatprep.subr.mxu0 0.0
        %558 = vmatpush1.msra.mxu0 0.0
        %559 = vmatprep.subr.mxu0 0.0
        %560 = vmatpush1.msra.mxu0 0.0
        %561 = vmatprep.subr.mxu0 0.0
        %562 = vmatpush1.msra.mxu0 0.0
        %563 = vmatprep.subr.mxu0 0.0
        %564 = vmatpush1.msra.mxu0 0.0
        %565 = vmatprep.subr.mxu0 0.0
        %566 = vmatpush1.msra.mxu0 0.0
        %567 = vmatprep.subr.mxu0 0.0
        %568 = vmatpush1.msra.mxu0 0.0
        %569 = vmatprep.subr.mxu0 0.0
        %570 = vmatpush1.msra.mxu0 0.0
        %571 = vmatprep.subr.mxu0 0.0
        %572 = vmatpush1.msra.mxu0 0.0
        %573 = vmatprep.subr.mxu0 0.0
        %574 = vmatpush1.msra.mxu0 0.0
        %575 = vmatprep.subr.mxu0 0.0
        %576 = vmatpush1.msra.mxu0 0.0
        %577 = vmatprep.subr.mxu0 0.0
        %578 = vmatpush1.msra.mxu0 0.0
        %579 = vmatprep.subr.mxu0 0.0
        %580 = vmatpush1.msra.mxu0 0.0
        %581 = vmatprep.subr.mxu0 0.0
        %582 = vmatpush1.msra.mxu0 0.0
        %583 = vmatprep.subr.mxu0 0.0
        %584 = vmatpush1.msra.mxu0 0.0
        %585 = vmatprep.subr.mxu0 0.0
        %586 = vmatpush1.msra.mxu0 0.0
        %587 = vmatprep.subr.mxu0 0.0
        %588 = vmatpush1.msra.mxu0 0.0
        %589 = vmatprep.subr.mxu0 0.0
        %590 = vmatpush1.msra.mxu0 0.0
        %591 = vmatprep.mubr.f32.mxu0 0.0
        %592 = vmatmul.mubr.f32.gmra.mrb[0].mxu0 %v492
        %v593 = vpop.f32.mrb[0].mxu0
        %v594 = vadd.f32 %v434, %v593
        %v595 = vpop.f32.mrb[0].mxu0
        %596 = vmatprep.mubr.f32.mxu0 0.0
        %597 = vmatmul.mubr.f32.gmra.mrb[0].mxu0 %v495
        %v598 = vpop.f32.mrb[0].mxu0
        %v599 = vadd.f32 %v439, %v598
        %v600 = vpop.f32.mrb[0].mxu0
        %601 = vmatprep.mubr.f32.mxu0 0.0
        %602 = vmatmul.mubr.f32.gmra.mrb[0].mxu0 %v498
        %v603 = vpop.f32.mrb[0].mxu0
        %v604 = vadd.f32 %v444, %v603
        %v605 = vpop.f32.mrb[0].mxu0
        %606 = vmatprep.mubr.f32.mxu0 0.0
        %607 = vmatmul.mubr.f32.gmra.mrb[0].mxu0 %v501
        %v608 = vpop.f32.mrb[0].mxu0
        %v609 = vadd.f32 %v449, %v608
        %v610 = vpop.f32.mrb[0].mxu0
        %611 = vmatprep.mubr.f32.mxu0 0.0
        %612 = vmatmul.mubr.f32.gmra.mrb[0].mxu0 %v504
        %v613 = vpop.f32.mrb[0].mxu0
        %v614 = vadd.f32 %v454, %v613
        %v615 = vpop.f32.mrb[0].mxu0
        %616 = vmatprep.mubr.f32.mxu0 0.0
        %617 = vmatmul.mubr.f32.gmra.mrb[0].mxu0 %v507
        %v618 = vpop.f32.mrb[0].mxu0
        %v619 = vadd.f32 %v459, %v618
        %v620 = vpop.f32.mrb[0].mxu0
        %621 = vmatprep.mubr.f32.mxu0 0.0
        %622 = vmatmul.mubr.f32.gmra.mrb[0].mxu0 %v510
        %v623 = vpop.f32.mrb[0].mxu0
        %v624 = vadd.f32 %v464, %v623
        %v625 = vpop.f32.mrb[0].mxu0
        %626 = vmatprep.mubr.f32.mxu0 0.0
        %627 = vmatmul.mubr.f32.gmra.mrb[0].mxu0 %v513
        %v628 = vpop.f32.mrb[0].mxu0
        %v629 = vadd.f32 %v469, %v628
        %v630 = vpop.f32.mrb[0].mxu0
        %631 = vmatprep.mubr.f32.mxu0 0.0
        %632 = vmatmul.mubr.f32.gmra.mrb[0].mxu0 %v516
        %v633 = vpop.f32.mrb[0].mxu0
        %v634 = vadd.f32 %v474, %v633
        %v635 = vpop.f32.mrb[0].mxu0
        %636 = vmatprep.mubr.f32.mxu0 0.0
        %637 = vmatmul.mubr.f32.gmra.mrb[0].mxu0 %v519
        %v638 = vpop.f32.mrb[0].mxu0
        %v639 = vadd.f32 %v479, %v638
        %v640 = vpop.f32.mrb[0].mxu0
        %641 = vmatprep.mubr.f32.mxu0 0.0
        %642 = vmatmul.mubr.f32.gmra.mrb[0].mxu0 %v522
        %v643 = vpop.f32.mrb[0].mxu0
        %v644 = vadd.f32 %v484, %v643
        %v645 = vpop.f32.mrb[0].mxu0
        %646 = vmatprep.mubr.f32.mxu0 0.0
        %647 = vmatmul.mubr.f32.gmra.mrb[0].mxu0 %v525
        %v648 = vpop.f32.mrb[0].mxu0
        %v649 = vadd.f32 %v489, %v648
        %v650 = vpop.f32.mrb[0].mxu0
        %651 = vdwg.mxu0
        %652 = vxpose.xlu0.b32.start [1/16] %v594, 128
        %653 = vxpose.xlu0.b32.cont [2/16] %v599, 128
        %654 = vxpose.xlu0.b32.cont [3/16] %v604, 128
        %655 = vxpose.xlu0.b32.cont [4/16] %v609, 128
        %656 = vxpose.xlu0.b32.cont [5/16] 0.0, 128
        %657 = vxpose.xlu0.b32.cont [6/16] 0.0, 128
        %658 = vxpose.xlu0.b32.cont [7/16] 0.0, 128
        %659 = vxpose.xlu0.b32.cont [8/16] 0.0, 128
        %660 = vxpose.xlu0.b32.cont [9/16] 0.0, 128
        %661 = vxpose.xlu0.b32.cont [10/16] 0.0, 128
        %662 = vxpose.xlu0.b32.cont [11/16] 0.0, 128
        %663 = vxpose.xlu0.b32.cont [12/16] 0.0, 128
        %664 = vxpose.xlu0.b32.cont [13/16] 0.0, 128
        %665 = vxpose.xlu0.b32.cont [14/16] 0.0, 128
        %666 = vxpose.xlu0.b32.cont [15/16] 0.0, 128
        %667 = vxpose.xlu0.b32.end [16/16] 0.0, 128
        %v668 = vpop.trf.xlu0
        %v669 = vpop.trf.xlu0
        %v670 = vpop.trf.xlu0
        %v671 = vpop.trf.xlu0
        %v672 = vpop.trf.xlu0
        %v673 = vpop.trf.xlu0
        %v674 = vpop.trf.xlu0
        %v675 = vpop.trf.xlu0
        %v676 = vpop.trf.xlu0
        %v677 = vpop.trf.xlu0
        %v678 = vpop.trf.xlu0
        %v679 = vpop.trf.xlu0
        %v680 = vpop.trf.xlu0
        %v681 = vpop.trf.xlu0
        %v682 = vpop.trf.xlu0
        %v683 = vpop.trf.xlu0
        %v685 = vsel %vm318, %v668, 0
        %687 = vmatprep.subr.mxu0 0.0
        %688 = vmatpush1.msra.mxu0 %v614
        %689 = vmatprep.subr.mxu0 0.0
        %690 = vmatpush1.msra.mxu0 %v619
        %691 = vmatprep.subr.mxu0 0.0
        %692 = vmatpush1.msra.mxu0 %v624
        %693 = vmatprep.subr.mxu0 0.0
        %694 = vmatpush1.msra.mxu0 %v629
        %695 = vmatprep.subr.mxu0 0.0
        %696 = vmatpush1.msra.mxu0 0.0
        %697 = vmatprep.subr.mxu0 0.0
        %698 = vmatpush1.msra.mxu0 0.0
        %699 = vmatprep.subr.mxu0 0.0
        %700 = vmatpush1.msra.mxu0 0.0
        %701 = vmatprep.subr.mxu0 0.0
        %702 = vmatpush1.msra.mxu0 0.0
        %703 = vmatprep.subr.mxu0 0.0
        %704 = vmatpush1.msra.mxu0 0.0
        %705 = vmatprep.subr.mxu0 0.0
        %706 = vmatpush1.msra.mxu0 0.0
        %707 = vmatprep.subr.mxu0 0.0
        %708 = vmatpush1.msra.mxu0 0.0
        %709 = vmatprep.subr.mxu0 0.0
        %710 = vmatpush1.msra.mxu0 0.0
        %711 = vmatprep.subr.mxu0 0.0
        %712 = vmatpush1.msra.mxu0 0.0
        %713 = vmatprep.subr.mxu0 0.0
        %714 = vmatpush1.msra.mxu0 0.0
        %715 = vmatprep.subr.mxu0 0.0
        %716 = vmatpush1.msra.mxu0 0.0
        %717 = vmatprep.subr.mxu0 0.0
        %718 = vmatpush1.msra.mxu0 0.0
        %719 = vmatprep.subr.mxu0 0.0
        %720 = vmatpush1.msra.mxu0 0.0
        %721 = vmatprep.subr.mxu0 0.0
        %722 = vmatpush1.msra.mxu0 0.0
        %723 = vmatprep.subr.mxu0 0.0
        %724 = vmatpush1.msra.mxu0 0.0
        %725 = vmatprep.subr.mxu0 0.0
        %726 = vmatpush1.msra.mxu0 0.0
        %727 = vmatprep.subr.mxu0 0.0
        %728 = vmatpush1.msra.mxu0 0.0
        %729 = vmatprep.subr.mxu0 0.0
        %730 = vmatpush1.msra.mxu0 0.0
        %731 = vmatprep.subr.mxu0 0.0
        %732 = vmatpush1.msra.mxu0 0.0
        %733 = vmatprep.subr.mxu0 0.0
        %734 = vmatpush1.msra.mxu0 0.0
        %735 = vmatprep.subr.mxu0 0.0
        %736 = vmatpush1.msra.mxu0 0.0
        %737 = vmatprep.subr.mxu0 0.0
        %738 = vmatpush1.msra.mxu0 0.0
        %739 = vmatprep.subr.mxu0 0.0
        %740 = vmatpush1.msra.mxu0 0.0
        %741 = vmatprep.subr.mxu0 0.0
        %742 = vmatpush1.msra.mxu0 0.0
        %743 = vmatprep.subr.mxu0 0.0
        %744 = vmatpush1.msra.mxu0 0.0
        %745 = vmatprep.subr.mxu0 0.0
        %746 = vmatpush1.msra.mxu0 0.0
        %747 = vmatprep.subr.mxu0 0.0
        %748 = vmatpush1.msra.mxu0 0.0
        %749 = vmatprep.subr.mxu0 0.0
        %750 = vmatpush1.msra.mxu0 0.0
        %751 = vmatprep.mubr.f32.mxu0 0.0
        %752 = vmatmul.mubr.f32.gmra.mrb[0].mxu0 %v685
        %v753 = vpop.f32.mrb[0].mxu0
        %v754 = vadd.f32 0.0, %v753
        %v755 = vpop.f32.mrb[0].mxu0
        %756 = vdwg.mxu0
        %vm757 = vcmask 64512
        %v758 = vsel %vm757, %v754, -inf
        %759 = vmax.xlane.f32.xlu0 %v758
        %v760 = vpop.xlane.xlu0 %759
        %v761 = vsub.f32 %v754, %v760
        %v762 = vmul.f32 %v761, 1.442695
        %v763 = vpow.pop %v762
        %v764 = vsel %vm757, %v763, 0.0
        %765 = vadd.xlane.f32.xlu0 %v764
        %v766 = vpop.xlane.xlu0 %765
        %v767 = vrcp.pop %v766
        %v768 = vmul.f32 %v763, %v767
        %v770 = vsel %vm757, %v634, 0
        %v773 = vsel %vm757, %v639, 0
        %v776 = vsel %vm757, %v644, 0
        %v779 = vsel %vm757, %v649, 0
        %v782 = vsel %vm757, %v768, 0
        %784 = vmatprep.subr.mxu0 0.0
        %785 = vmatpush1.xpose.msra.mxu0 %v782
        %786 = vmatprep.subr.mxu0 0.0
        %787 = vmatpush1.xpose.msra.mxu0 0.0
        %788 = vmatprep.subr.mxu0 0.0
        %789 = vmatpush1.xpose.msra.mxu0 0.0
        %790 = vmatprep.subr.mxu0 0.0
        %791 = vmatpush1.xpose.msra.mxu0 0.0
        %792 = vmatprep.subr.mxu0 0.0
        %793 = vmatpush1.xpose.msra.mxu0 0.0
        %794 = vmatprep.subr.mxu0 0.0
        %795 = vmatpush1.xpose.msra.mxu0 0.0
        %796 = vmatprep.subr.mxu0 0.0
        %797 = vmatpush1.xpose.msra.mxu0 0.0
        %798 = vmatprep.subr.mxu0 0.0
        %799 = vmatpush1.xpose.msra.mxu0 0.0
        %800 = vmatprep.subr.mxu0 0.0
        %801 = vmatpush1.xpose.msra.mxu0 0.0
        %802 = vmatprep.subr.mxu0 0.0
        %803 = vmatpush1.xpose.msra.mxu0 0.0
        %804 = vmatprep.subr.mxu0 0.0
        %805 = vmatpush1.xpose.msra.mxu0 0.0
        %806 = vmatprep.subr.mxu0 0.0
        %807 = vmatpush1.xpose.msra.mxu0 0.0
        %808 = vmatprep.subr.mxu0 0.0
        %809 = vmatpush1.xpose.msra.mxu0 0.0
        %810 = vmatprep.subr.mxu0 0.0
        %811 = vmatpush1.xpose.msra.mxu0 0.0
        %812 = vmatprep.subr.mxu0 0.0
        %813 = vmatpush1.xpose.msra.mxu0 0.0
        %814 = vmatprep.subr.mxu0 0.0
        %815 = vmatpush1.xpose.msra.mxu0 0.0
        %816 = vmatprep.subr.mxu0 0.0
        %817 = vmatpush1.xpose.msra.mxu0 0.0
        %818 = vmatprep.subr.mxu0 0.0
        %819 = vmatpush1.xpose.msra.mxu0 0.0
        %820 = vmatprep.subr.mxu0 0.0
        %821 = vmatpush1.xpose.msra.mxu0 0.0
        %822 = vmatprep.subr.mxu0 0.0
        %823 = vmatpush1.xpose.msra.mxu0 0.0
        %824 = vmatprep.subr.mxu0 0.0
        %825 = vmatpush1.xpose.msra.mxu0 0.0
        %826 = vmatprep.subr.mxu0 0.0
        %827 = vmatpush1.xpose.msra.mxu0 0.0
        %828 = vmatprep.subr.mxu0 0.0
        %829 = vmatpush1.xpose.msra.mxu0 0.0
        %830 = vmatprep.subr.mxu0 0.0
        %831 = vmatpush1.xpose.msra.mxu0 0.0
        %832 = vmatprep.subr.mxu0 0.0
        %833 = vmatpush1.xpose.msra.mxu0 0.0
        %834 = vmatprep.subr.mxu0 0.0
        %835 = vmatpush1.xpose.msra.mxu0 0.0
        %836 = vmatprep.subr.mxu0 0.0
        %837 = vmatpush1.xpose.msra.mxu0 0.0
        %838 = vmatprep.subr.mxu0 0.0
        %839 = vmatpush1.xpose.msra.mxu0 0.0
        %840 = vmatprep.subr.mxu0 0.0
        %841 = vmatpush1.xpose.msra.mxu0 0.0
        %842 = vmatprep.subr.mxu0 0.0
        %843 = vmatpush1.xpose.msra.mxu0 0.0
        %844 = vmatprep.subr.mxu0 0.0
        %845 = vmatpush1.xpose.msra.mxu0 0.0
        %846 = vmatprep.subr.mxu0 0.0
        %847 = vmatpush1.xpose.msra.mxu0 0.0
        %848 = vmatprep.mubr.f32.mxu0 0.0
        %849 = vmatmul.mubr.f32.gmra.mrb[0].mxu0 %v770
        %v850 = vpop.f32.mrb[0].mxu0
        %v851 = vadd.f32 0.0, %v850
        %v852 = vpop.f32.mrb[0].mxu0
        %853 = vmatprep.mubr.f32.mxu0 0.0
        %854 = vmatmul.mubr.f32.gmra.mrb[0].mxu0 %v773
        %v855 = vpop.f32.mrb[0].mxu0
        %v856 = vadd.f32 0.0, %v855
        %v857 = vpop.f32.mrb[0].mxu0
        %858 = vmatprep.mubr.f32.mxu0 0.0
        %859 = vmatmul.mubr.f32.gmra.mrb[0].mxu0 %v776
        %v860 = vpop.f32.mrb[0].mxu0
        %v861 = vadd.f32 0.0, %v860
        %v862 = vpop.f32.mrb[0].mxu0
        %863 = vmatprep.mubr.f32.mxu0 0.0
        %864 = vmatmul.mubr.f32.gmra.mrb[0].mxu0 %v779
        %v865 = vpop.f32.mrb[0].mxu0
        %v866 = vadd.f32 0.0, %v865
        %v867 = vpop.f32.mrb[0].mxu0
        %868 = vdwg.mxu0
        %v869 = vld [vmem:[%s3] sm:$0xff]
        %v870 = vld [vmem:[%s3 + $0x8] sm:$0xff]
        %v871 = vld [vmem:[%s3 + $0x10] sm:$0xff]
        %v872 = vld [vmem:[%s3 + $0x18] sm:$0xff]
        %v874 = vsel %vm318, %v869, 0
        %v877 = vsel %vm318, %v870, 0
        %v880 = vsel %vm318, %v871, 0
        %v883 = vsel %vm318, %v872, 0
        %885 = vmatprep.subr.mxu0 0.0
        %886 = vmatpush1.msra.mxu0 %v851
        %887 = vmatprep.subr.mxu0 0.0
        %888 = vmatpush1.msra.mxu0 %v856
        %889 = vmatprep.subr.mxu0 0.0
        %890 = vmatpush1.msra.mxu0 %v861
        %891 = vmatprep.subr.mxu0 0.0
        %892 = vmatpush1.msra.mxu0 %v866
        %893 = vmatprep.subr.mxu0 0.0
        %894 = vmatpush1.msra.mxu0 0.0
        %895 = vmatprep.subr.mxu0 0.0
        %896 = vmatpush1.msra.mxu0 0.0
        %897 = vmatprep.subr.mxu0 0.0
        %898 = vmatpush1.msra.mxu0 0.0
        %899 = vmatprep.subr.mxu0 0.0
        %900 = vmatpush1.msra.mxu0 0.0
        %901 = vmatprep.subr.mxu0 0.0
        %902 = vmatpush1.msra.mxu0 0.0
        %903 = vmatprep.subr.mxu0 0.0
        %904 = vmatpush1.msra.mxu0 0.0
        %905 = vmatprep.subr.mxu0 0.0
        %906 = vmatpush1.msra.mxu0 0.0
        %907 = vmatprep.subr.mxu0 0.0
        %908 = vmatpush1.msra.mxu0 0.0
        %909 = vmatprep.subr.mxu0 0.0
        %910 = vmatpush1.msra.mxu0 0.0
        %911 = vmatprep.subr.mxu0 0.0
        %912 = vmatpush1.msra.mxu0 0.0
        %913 = vmatprep.subr.mxu0 0.0
        %914 = vmatpush1.msra.mxu0 0.0
        %915 = vmatprep.subr.mxu0 0.0
        %916 = vmatpush1.msra.mxu0 0.0
        %917 = vmatprep.subr.mxu0 0.0
        %918 = vmatpush1.msra.mxu0 0.0
        %919 = vmatprep.subr.mxu0 0.0
        %920 = vmatpush1.msra.mxu0 0.0
        %921 = vmatprep.subr.mxu0 0.0
        %922 = vmatpush1.msra.mxu0 0.0
        %923 = vmatprep.subr.mxu0 0.0
        %924 = vmatpush1.msra.mxu0 0.0
        %925 = vmatprep.subr.mxu0 0.0
        %926 = vmatpush1.msra.mxu0 0.0
        %927 = vmatprep.subr.mxu0 0.0
        %928 = vmatpush1.msra.mxu0 0.0
        %929 = vmatprep.subr.mxu0 0.0
        %930 = vmatpush1.msra.mxu0 0.0
        %931 = vmatprep.subr.mxu0 0.0
        %932 = vmatpush1.msra.mxu0 0.0
        %933 = vmatprep.subr.mxu0 0.0
        %934 = vmatpush1.msra.mxu0 0.0
        %935 = vmatprep.subr.mxu0 0.0
        %936 = vmatpush1.msra.mxu0 0.0
        %937 = vmatprep.subr.mxu0 0.0
        %938 = vmatpush1.msra.mxu0 0.0
        %939 = vmatprep.subr.mxu0 0.0
        %940 = vmatpush1.msra.mxu0 0.0
        %941 = vmatprep.subr.mxu0 0.0
        %942 = vmatpush1.msra.mxu0 0.0
        %943 = vmatprep.subr.mxu0 0.0
        %944 = vmatpush1.msra.mxu0 0.0
        %945 = vmatprep.subr.mxu0 0.0
        %946 = vmatpush1.msra.mxu0 0.0
        %947 = vmatprep.subr.mxu0 0.0
        %948 = vmatpush1.msra.mxu0 0.0
        %949 = vmatprep.mubr.f32.mxu0 0.0
        %950 = vmatmul.mubr.f32.gmra.mrb[0].mxu0 %v874
        %v951 = vpop.f32.mrb[0].mxu0
        %v952 = vadd.f32 0.0, %v951
        %v953 = vpop.f32.mrb[0].mxu0
        %954 = vmatprep.mubr.f32.mxu0 0.0
        %955 = vmatmul.mubr.f32.gmra.mrb[0].mxu0 %v877
        %v956 = vpop.f32.mrb[0].mxu0
        %v957 = vadd.f32 0.0, %v956
        %v958 = vpop.f32.mrb[0].mxu0
        %959 = vmatprep.mubr.f32.mxu0 0.0
        %960 = vmatmul.mubr.f32.gmra.mrb[0].mxu0 %v880
        %v961 = vpop.f32.mrb[0].mxu0
        %v962 = vadd.f32 0.0, %v961
        %v963 = vpop.f32.mrb[0].mxu0
        %964 = vmatprep.mubr.f32.mxu0 0.0
        %965 = vmatmul.mubr.f32.gmra.mrb[0].mxu0 %v883
        %v966 = vpop.f32.mrb[0].mxu0
        %v967 = vadd.f32 0.0, %v966
        %v968 = vpop.f32.mrb[0].mxu0
        %969 = vdwg.mxu0
        %v970 = vadd.f32 %v401, %v952
        %v971 = vadd.f32 %v406, %v957
        %v972 = vadd.f32 %v411, %v962
        %v973 = vadd.f32 %v416, %v967
        %975 = vset.pattern.permute.xlu0 0
        %976 = vperm.xlu0 %975, %v290
        %v977 = vpop.permute.xlu0 %976
        %980 = vset.pattern.permute.xlu0 0
        %981 = vperm.xlu0 %980, %v291
        %v982 = vpop.permute.xlu0 %981
        %985 = vset.pattern.permute.xlu0 0
        %986 = vperm.xlu0 %985, %v292
        %v987 = vpop.permute.xlu0 %986
        %990 = vset.pattern.permute.xlu0 0
        %991 = vperm.xlu0 %990, %v293
        %v992 = vpop.permute.xlu0 %991
        %v994 = vadd.f32 %v970, %v977
        %v995 = vadd.f32 %v971, %v982
        %v996 = vadd.f32 %v972, %v987
        %v997 = vadd.f32 %v973, %v992
        %v998 = vsel %vm757, %v994, 0.0
        %v999 = vsel %vm757, %v995, 0.0
        %v1000 = vadd.f32 %v998, %v999
        %v1001 = vsel %vm757, %v996, 0.0
        %v1002 = vadd.f32 %v1000, %v1001
        %v1003 = vsel %vm757, %v997, 0.0
        %v1004 = vadd.f32 %v1002, %v1003
        %v1005 = vrot.slane %v1004, 4
        %v1006 = vadd.f32 %v1004, %v1005
        %v1007 = vrot.slane %v1006, 2
        %v1008 = vadd.f32 %v1006, %v1007
        %v1009 = vrot.slane %v1008, 1
        %v1010 = vadd.f32 %v1008, %v1009
        %v1011 = vrcp.pop 32.0
        %v1012 = vmul.f32 %v1010, %v1011
        %v1013 = vsub.f32 %v994, %v1012
        %v1014 = vsub.f32 %v995, %v1012
        %v1015 = vsub.f32 %v996, %v1012
        %v1016 = vsub.f32 %v997, %v1012
        %v1017 = vmul.f32 %v1013, %v1013
        %v1018 = vmul.f32 %v1014, %v1014
        %v1019 = vmul.f32 %v1015, %v1015
        %v1020 = vmul.f32 %v1016, %v1016
        %v1021 = vsel %vm757, %v1017, 0.0
        %v1022 = vsel %vm757, %v1018, 0.0
        %v1023 = vadd.f32 %v1021, %v1022
        %v1024 = vsel %vm757, %v1019, 0.0
        %v1025 = vadd.f32 %v1023, %v1024
        %v1026 = vsel %vm757, %v1020, 0.0
        %v1027 = vadd.f32 %v1025, %v1026
        %v1028 = vrot.slane %v1027, 4
        %v1029 = vadd.f32 %v1027, %v1028
        %v1030 = vrot.slane %v1029, 2
        %v1031 = vadd.f32 %v1029, %v1030
        %v1032 = vrot.slane %v1031, 1
        %v1033 = vadd.f32 %v1031, %v1032
        %v1034 = vmul.f32 %v1033, %v1011
        %v1035 = vadd.f32 %v1034, 1e-05
        %v1036 = vrsqrt.pop %v1035
        %v1037 = vmul.f32 %v1013, %v1036
        %v1038 = vmul.f32 %v1014, %v1036
        %v1039 = vmul.f32 %v1015, %v1036
        %v1040 = vmul.f32 %v1016, %v1036
        %v1041 = vld [vmem:[%s5] sm:$0xff]
        %v1042 = vld [vmem:[%s6] sm:$0xff]
        %1044 = vset.pattern.permute.xlu0 0
        %1045 = vperm.xlu0 %1044, %v1042
        %v1046 = vpop.permute.xlu0 %1045
        %v1049 = vsel %vm318, %v1041, 0
        %1051 = vmatprep.subr.mxu0 0.0
        %1052 = vmatpush1.msra.mxu0 %v1037
        %1053 = vmatprep.subr.mxu0 0.0
        %1054 = vmatpush1.msra.mxu0 %v1038
        %1055 = vmatprep.subr.mxu0 0.0
        %1056 = vmatpush1.msra.mxu0 %v1039
        %1057 = vmatprep.subr.mxu0 0.0
        %1058 = vmatpush1.msra.mxu0 %v1040
        %1059 = vmatprep.subr.mxu0 0.0
        %1060 = vmatpush1.msra.mxu0 0.0
        %1061 = vmatprep.subr.mxu0 0.0
        %1062 = vmatpush1.msra.mxu0 0.0
        %1063 = vmatprep.subr.mxu0 0.0
        %1064 = vmatpush1.msra.mxu0 0.0
        %1065 = vmatprep.subr.mxu0 0.0
        %1066 = vmatpush1.msra.mxu0 0.0
        %1067 = vmatprep.subr.mxu0 0.0
        %1068 = vmatpush1.msra.mxu0 0.0
        %1069 = vmatprep.subr.mxu0 0.0
        %1070 = vmatpush1.msra.mxu0 0.0
        %1071 = vmatprep.subr.mxu0 0.0
        %1072 = vmatpush1.msra.mxu0 0.0
        %1073 = vmatprep.subr.mxu0 0.0
        %1074 = vmatpush1.msra.mxu0 0.0
        %1075 = vmatprep.subr.mxu0 0.0
        %1076 = vmatpush1.msra.mxu0 0.0
        %1077 = vmatprep.subr.mxu0 0.0
        %1078 = vmatpush1.msra.mxu0 0.0
        %1079 = vmatprep.subr.mxu0 0.0
        %1080 = vmatpush1.msra.mxu0 0.0
        %1081 = vmatprep.subr.mxu0 0.0
        %1082 = vmatpush1.msra.mxu0 0.0
        %1083 = vmatprep.subr.mxu0 0.0
        %1084 = vmatpush1.msra.mxu0 0.0
        %1085 = vmatprep.subr.mxu0 0.0
        %1086 = vmatpush1.msra.mxu0 0.0
        %1087 = vmatprep.subr.mxu0 0.0
        %1088 = vmatpush1.msra.mxu0 0.0
        %1089 = vmatprep.subr.mxu0 0.0
        %1090 = vmatpush1.msra.mxu0 0.0
        %1091 = vmatprep.subr.mxu0 0.0
        %1092 = vmatpush1.msra.mxu0 0.0
        %1093 = vmatprep.subr.mxu0 0.0
        %1094 = vmatpush1.msra.mxu0 0.0
        %1095 = vmatprep.subr.mxu0 0.0
        %1096 = vmatpush1.msra.mxu0 0.0
        %1097 = vmatprep.subr.mxu0 0.0
        %1098 = vmatpush1.msra.mxu0 0.0
        %1099 = vmatprep.subr.mxu0 0.0
        %1100 = vmatpush1.msra.mxu0 0.0
        %1101 = vmatprep.subr.mxu0 0.0
        %1102 = vmatpush1.msra.mxu0 0.0
        %1103 = vmatprep.subr.mxu0 0.0
        %1104 = vmatpush1.msra.mxu0 0.0
        %1105 = vmatprep.subr.mxu0 0.0
        %1106 = vmatpush1.msra.mxu0 0.0
        %1107 = vmatprep.subr.mxu0 0.0
        %1108 = vmatpush1.msra.mxu0 0.0
        %1109 = vmatprep.subr.mxu0 0.0
        %1110 = vmatpush1.msra.mxu0 0.0
        %1111 = vmatprep.subr.mxu0 0.0
        %1112 = vmatpush1.msra.mxu0 0.0
        %1113 = vmatprep.subr.mxu0 0.0
        %1114 = vmatpush1.msra.mxu0 0.0
        %1115 = vmatprep.mubr.f32.mxu0 0.0
        %1116 = vmatmul.mubr.f32.gmra.mrb[0].mxu0 %v1049
        %v1117 = vpop.f32.mrb[0].mxu0
        %v1118 = vadd.f32 %v1046, %v1117
        %v1119 = vpop.f32.mrb[0].mxu0
        %1120 = vdwg.mxu0
        %v1121 = vmax.f32 %v1118, 0.0
        %1122 = vset.pattern.permute.xlu0 1
        %1123 = vperm.xlu0 %1122, %v1042
        %v1124 = vpop.permute.xlu0 %1123
        %1126 = vrot.lane.b32.xlu0 %v1041, 96
        %v1127 = vpop.permute.xlu0 %1126
        %v1128 = vsel %vm757, %v1127, 0
        %1130 = vmatprep.subr.mxu0 0.0
        %1131 = vmatpush1.msra.mxu0 %v1121
        %1132 = vmatprep.subr.mxu0 0.0
        %1133 = vmatpush1.msra.mxu0 0.0
        %1134 = vmatprep.subr.mxu0 0.0
        %1135 = vmatpush1.msra.mxu0 0.0
        %1136 = vmatprep.subr.mxu0 0.0
        %1137 = vmatpush1.msra.mxu0 0.0
        %1138 = vmatprep.subr.mxu0 0.0
        %1139 = vmatpush1.msra.mxu0 0.0
        %1140 = vmatprep.subr.mxu0 0.0
        %1141 = vmatpush1.msra.mxu0 0.0
        %1142 = vmatprep.subr.mxu0 0.0
        %1143 = vmatpush1.msra.mxu0 0.0
        %1144 = vmatprep.subr.mxu0 0.0
        %1145 = vmatpush1.msra.mxu0 0.0
        %1146 = vmatprep.subr.mxu0 0.0
        %1147 = vmatpush1.msra.mxu0 0.0
        %1148 = vmatprep.subr.mxu0 0.0
        %1149 = vmatpush1.msra.mxu0 0.0
        %1150 = vmatprep.subr.mxu0 0.0
        %1151 = vmatpush1.msra.mxu0 0.0
        %1152 = vmatprep.subr.mxu0 0.0
        %1153 = vmatpush1.msra.mxu0 0.0
        %1154 = vmatprep.subr.mxu0 0.0
        %1155 = vmatpush1.msra.mxu0 0.0
        %1156 = vmatprep.subr.mxu0 0.0
        %1157 = vmatpush1.msra.mxu0 0.0
        %1158 = vmatprep.subr.mxu0 0.0
        %1159 = vmatpush1.msra.mxu0 0.0
        %1160 = vmatprep.subr.mxu0 0.0
        %1161 = vmatpush1.msra.mxu0 0.0
        %1162 = vmatprep.subr.mxu0 0.0
        %1163 = vmatpush1.msra.mxu0 0.0
        %1164 = vmatprep.subr.mxu0 0.0
        %1165 = vmatpush1.msra.mxu0 0.0
        %1166 = vmatprep.subr.mxu0 0.0
        %1167 = vmatpush1.msra.mxu0 0.0
        %1168 = vmatprep.subr.mxu0 0.0
        %1169 = vmatpush1.msra.mxu0 0.0
        %1170 = vmatprep.subr.mxu0 0.0
        %1171 = vmatpush1.msra.mxu0 0.0
        %1172 = vmatprep.subr.mxu0 0.0
        %1173 = vmatpush1.msra.mxu0 0.0
        %1174 = vmatprep.subr.mxu0 0.0
        %1175 = vmatpush1.msra.mxu0 0.0
        %1176 = vmatprep.subr.mxu0 0.0
        %1177 = vmatpush1.msra.mxu0 0.0
        %1178 = vmatprep.subr.mxu0 0.0
        %1179 = vmatpush1.msra.mxu0 0.0
        %1180 = vmatprep.subr.mxu0 0.0
        %1181 = vmatpush1.msra.mxu0 0.0
        %1182 = vmatprep.subr.mxu0 0.0
        %1183 = vmatpush1.msra.mxu0 0.0
        %1184 = vmatprep.subr.mxu0 0.0
        %1185 = vmatpush1.msra.mxu0 0.0
        %1186 = vmatprep.subr.mxu0 0.0
        %1187 = vmatpush1.msra.mxu0 0.0
        %1188 = vmatprep.subr.mxu0 0.0
        %1189 = vmatpush1.msra.mxu0 0.0
        %1190 = vmatprep.subr.mxu0 0.0
        %1191 = vmatpush1.msra.mxu0 0.0
        %1192 = vmatprep.subr.mxu0 0.0
        %1193 = vmatpush1.msra.mxu0 0.0
        %1194 = vmatprep.mubr.f32.mxu0 0.0
        %1195 = vmatmul.mubr.f32.gmra.mrb[0].mxu0 %v1128
        %v1196 = vpop.f32.mrb[0].mxu0
        %v1197 = vadd.f32 %v1124, %v1196
        %v1198 = vpop.f32.mrb[0].mxu0
        %1199 = vdwg.mxu0
        %v1200 = vmax.f32 %v1197, 0.0
        %1201 = vset.pattern.permute.xlu0 2
        %1202 = vperm.xlu0 %1201, %v1042
        %v1203 = vpop.permute.xlu0 %1202
        %1205 = vrot.lane.b32.xlu0 %v1041, 88
        %v1206 = vpop.permute.xlu0 %1205
        %vm1207 = vcmask 31744
        %v1208 = vsel %vm1207, %v1206, 0
        %vm1210 = vcmask 1043456
        %v1212 = vsel %vm1210, %v1200, 0
        %1214 = vmatprep.subr.mxu0 0.0
        %1215 = vmatpush1.msra.mxu0 %v1212
        %1216 = vmatprep.subr.mxu0 0.0
        %1217 = vmatpush1.msra.mxu0 0.0
        %1218 = vmatprep.subr.mxu0 0.0
        %1219 = vmatpush1.msra.mxu0 0.0
        %1220 = vmatprep.subr.mxu0 0.0
        %1221 = vmatpush1.msra.mxu0 0.0
        %1222 = vmatprep.subr.mxu0 0.0
        %1223 = vmatpush1.msra.mxu0 0.0
        %1224 = vmatprep.subr.mxu0 0.0
        %1225 = vmatpush1.msra.mxu0 0.0
        %1226 = vmatprep.subr.mxu0 0.0
        %1227 = vmatpush1.msra.mxu0 0.0
        %1228 = vmatprep.subr.mxu0 0.0
        %1229 = vmatpush1.msra.mxu0 0.0
        %1230 = vmatprep.subr.mxu0 0.0
        %1231 = vmatpush1.msra.mxu0 0.0
        %1232 = vmatprep.subr.mxu0 0.0
        %1233 = vmatpush1.msra.mxu0 0.0
        %1234 = vmatprep.subr.mxu0 0.0
        %1235 = vmatpush1.msra.mxu0 0.0
        %1236 = vmatprep.subr.mxu0 0.0
        %1237 = vmatpush1.msra.mxu0 0.0
        %1238 = vmatprep.subr.mxu0 0.0
        %1239 = vmatpush1.msra.mxu0 0.0
        %1240 = vmatprep.subr.mxu0 0.0
        %1241 = vmatpush1.msra.mxu0 0.0
        %1242 = vmatprep.subr.mxu0 0.0
        %1243 = vmatpush1.msra.mxu0 0.0
        %1244 = vmatprep.subr.mxu0 0.0
        %1245 = vmatpush1.msra.mxu0 0.0
        %1246 = vmatprep.subr.mxu0 0.0
        %1247 = vmatpush1.msra.mxu0 0.0
        %1248 = vmatprep.subr.mxu0 0.0
        %1249 = vmatpush1.msra.mxu0 0.0
        %1250 = vmatprep.subr.mxu0 0.0
        %1251 = vmatpush1.msra.mxu0 0.0
        %1252 = vmatprep.subr.mxu0 0.0
        %1253 = vmatpush1.msra.mxu0 0.0
        %1254 = vmatprep.subr.mxu0 0.0
        %1255 = vmatpush1.msra.mxu0 0.0
        %1256 = vmatprep.subr.mxu0 0.0
        %1257 = vmatpush1.msra.mxu0 0.0
        %1258 = vmatprep.subr.mxu0 0.0
        %1259 = vmatpush1.msra.mxu0 0.0
        %1260 = vmatprep.subr.mxu0 0.0
        %1261 = vmatpush1.msra.mxu0 0.0
        %1262 = vmatprep.subr.mxu0 0.0
        %1263 = vmatpush1.msra.mxu0 0.0
        %1264 = vmatprep.subr.mxu0 0.0
        %1265 = vmatpush1.msra.mxu0 0.0
        %1266 = vmatprep.subr.mxu0 0.0
        %1267 = vmatpush1.msra.mxu0 0.0
        %1268 = vmatprep.subr.mxu0 0.0
        %1269 = vmatpush1.msra.mxu0 0.0
        %1270 = vmatprep.subr.mxu0 0.0
        %1271 = vmatpush1.msra.mxu0 0.0
        %1272 = vmatprep.subr.mxu0 0.0
        %1273 = vmatpush1.msra.mxu0 0.0
        %1274 = vmatprep.subr.mxu0 0.0
        %1275 = vmatpush1.msra.mxu0 0.0
        %1276 = vmatprep.subr.mxu0 0.0
        %1277 = vmatpush1.msra.mxu0 0.0
        %1278 = vmatprep.mubr.f32.mxu0 0.0
        %1279 = vmatmul.mubr.f32.gmra.mrb[0].mxu0 %v1208
        %v1280 = vpop.f32.mrb[0].mxu0
        %v1281 = vadd.f32 %v1203, %v1280
        %v1282 = vpop.f32.mrb[0].mxu0
        %1283 = vdwg.mxu0
        %v1284 = vmax.f32 %v1281, 0.0
        %vm1285 = vcmask 57344
        %1286 = vst.msk [vmem:[%s268] sm:$0x1] %vm1285, %v1284
        %s1287 = sand.u32 %s181, 1
        %s1288 = scalar_lea.sflag [#allocation3], %s1287
        %s1289 = sand.u32 %s181, 1
        %s1290 = scalar_lea.vmem [#allocation2], %s1289
        // Predicated region
        $region49: #{tpu_custom_call.1} parent=47 // pred_check
          %p1291 = pneg %p191
        $region50: #{tpu_custom_call.1} parent=47 // pred_check_branch
          %1293 = sbr.rel (%p1291) target = $region52
        $region51: #{tpu_custom_call.1} parent=47 // pred_region
          %s1295 = ssub.s32 16, 16
          %1296 = vsyncadd %s1288, %s1295
          %s1297 = smul.addr %s21, 16
          %s1298 = scalar_lea.hbm %s7, %s1297
          %s1300 = sshll.u32 %s1290, 4
          %s1301 = int_to_ptr.vmem [resolvable:$true] %s1300
          %1303 = dma.vmem_to_hbm [thread:$0]  %s1301, 16, %s1298, %s1288
        $region52: #{tpu_custom_call.1} parent=47 // pred_fallthru
          _
      $region48: #{tpu_custom_call.1} parent=5 // pred_fallthru
        _
      %p1304 = scmp.le.s32.totalorder 2, %s16
      // Predicated region
      $region53: #{tpu_custom_call.1} parent=5 // pred_check
        %p1305 = pneg %p1304
      $region54: #{tpu_custom_call.1} parent=5 // pred_check_branch
        %1307 = sbr.rel (%p1305) target = $region56
      $region55: #{tpu_custom_call.1} parent=5 // pred_region
        %s1308 = ssub.s32 %s16, 2
        // Predicated region
        $region57: #{tpu_custom_call.1} parent=55 // pred_check
          %p1309 = pneg %p197
        $region58: #{tpu_custom_call.1} parent=55 // pred_check_branch
          %1311 = sbr.rel (%p1309) target = $region60
        $region59: #{tpu_custom_call.1} parent=55 // pred_region
          %s1312 = sand.u32 %s182, 1
          %s1313 = scalar_lea.sflag [#allocation3], %s1312
          %s1314 = sand.u32 %s182, 1
          %s1315 = scalar_lea.vmem [#allocation2], %s1314
          %1316 = dma.done %s1313, 16
        $region60: #{tpu_custom_call.1} parent=55 // pred_fallthru
          _
      $region56: #{tpu_custom_call.1} parent=5 // pred_fallthru
        _
    $region6: #{tpu_custom_call.1} parent=1 // loop_footer
      %s20 = sadd.s32 1, %s16
    $region7: #{tpu_custom_call.1} parent=1 // loop_footer_branch
      %15 = sbr.rel target = $region3
    $region8: #{tpu_custom_call.1} parent=1 // loop_exit
      _
    %1317 = vsyncpa [#allocation3], 1
    %s1318 = scalar_lea.sflag [#allocation3], 1
    %1319 = vsyncpa %s1318, 1

</llo_original>
